<compile_context>
chip_gen: v5e
topology: v5e:2x2
jax: 0.10.0
libtpu: 0.0.40
codegen_flags: <defaults>
</compile_context>

<pallas_src>
import jax
import jax.numpy as jnp
from jax import lax
from jax.experimental import pallas as pl
from jax.experimental.pallas import tpu as pltpu


# ----------------------------------------------------------------------------
# Pallas kernel 1: one layer of the bidirectional LSTM (both directions fused).
#   x_ref   : (Bb, S, Din)          batch block of the layer input (batch-major)
#   wih_ref : (Din, 8H) = [W_ih_f^T | W_ih_b^T]
#   whh_ref : (H, 8H)   = [W_hh_f^T | W_hh_b^T]
#   b_ref   : (1, 8H)   = [b_f | b_b]          (b_ih + b_hh per direction)
#   out_ref : (Bb, S, 2H)  concatenated per-timestep hiddens [fwd | bwd]
#   hn_ref  : (Bb, 2, H)   final hidden of each direction
#   gx_scr  : (Bb, S, 8H)  VMEM scratch holding the hoisted input projection
# PyTorch LSTM gate order inside each 4H block: i, f, g, o.
# ----------------------------------------------------------------------------
def _bilstm_layer_kernel(x_ref, wih_ref, whh_ref, b_ref, out_ref, hn_ref, gx_scr):
    Bb, S, Din = x_ref.shape
    H = hn_ref.shape[-1]
    G = 4 * H

    # ---- hoisted input projection: ONE (Bb*S, Din) x (Din, 8H) MXU matmul ----
    x_flat = x_ref[...].reshape(Bb * S, Din)
    gx = jnp.dot(x_flat, wih_ref[...], preferred_element_type=jnp.float32) + b_ref[...]
    gx_scr[...] = gx.reshape(Bb, S, 2 * G)

    whh = whh_ref[...]                       # (H, 8H)
    whh_f = whh[:, :G]                       # (H, 4H), vreg-aligned split
    whh_b = whh[:, G:]

    def cell(gates, c):
        i_g = jax.nn.sigmoid(gates[:, 0 * H:1 * H])
        f_g = jax.nn.sigmoid(gates[:, 1 * H:2 * H])
        g_g = jnp.tanh(gates[:, 2 * H:3 * H])
        o_g = jax.nn.sigmoid(gates[:, 3 * H:4 * H])
        c_new = f_g * c + i_g * g_g
        h_new = o_g * jnp.tanh(c_new)
        return h_new, c_new

    zeros = jnp.zeros((Bb, H), jnp.float32)
    h_f, c_f = zeros, zeros
    h_b, c_b = zeros, zeros

    # Fully unrolled (S static & small); fwd and bwd steps are interleaved so
    # the two independent recurrences hide each other's MXU/EUP latency.
    for s in range(S):
        tf = s
        tb = S - 1 - s
        gates_f = gx_scr[:, tf, :G] + jnp.dot(
            h_f, whh_f, preferred_element_type=jnp.float32)
        gates_b = gx_scr[:, tb, G:] + jnp.dot(
            h_b, whh_b, preferred_element_type=jnp.float32)
        h_f, c_f = cell(gates_f, c_f)
        h_b, c_b = cell(gates_b, c_b)
        out_ref[:, tf, :H] = h_f             # forward half of the concat output
        out_ref[:, tb, H:] = h_b             # backward half, time-aligned

    hn_ref[:, 0, :] = h_f                    # fwd final hidden (time S-1)
    hn_ref[:, 1, :] = h_b                    # bwd final hidden (time 0)


def bilstm_layer(x_bsd, wih_t2, whh_t2, bias2, hidden_size, block_b=None):
    B, S, Din = x_bsd.shape
    H = hidden_size
    if block_b is None:
        block_b = B if B <= 8 else 8         # tile larger batches (parallel grid)
    assert B % block_b == 0
    grid = (B // block_b,)
    out_shape = (jax.ShapeDtypeStruct((B, S, 2 * H), jnp.float32),
                 jax.ShapeDtypeStruct((B, 2, H), jnp.float32))
    return pl.pallas_call(
        _bilstm_layer_kernel,
        out_shape=out_shape,
        grid=grid,
        in_specs=[
            pl.BlockSpec((block_b, S, Din), lambda b: (b, 0, 0)),
            pl.BlockSpec((Din, 8 * H), lambda b: (0, 0)),
            pl.BlockSpec((H, 8 * H), lambda b: (0, 0)),
            pl.BlockSpec((1, 8 * H), lambda b: (0, 0)),
        ],
        out_specs=(
            pl.BlockSpec((block_b, S, 2 * H), lambda b: (b, 0, 0)),
            pl.BlockSpec((block_b, 2, H), lambda b: (b, 0, 0)),
        ),
        scratch_shapes=[pltpu.VMEM((block_b, S, 8 * H), jnp.float32)],
        compiler_params=pltpu.CompilerParams(
            dimension_semantics=("parallel",),
            vmem_limit_bytes=32 * 1024 * 1024),
    )(x_bsd, wih_t2, whh_t2, bias2)


# ----------------------------------------------------------------------------
# Pallas kernel 2: attention (Linear+ReLU, bmm, softmax, bmm) + final fc.
# One grid step handles a whole batch BLOCK (batched MXU contractions), not a
# single batch element -> far fewer grid steps for large B.
#   out_ref  : (Bb, S, 2H)  top-layer [fwd | bwd] hiddens for this batch block
#   hsum_ref : (Bb, H)      sum of all final hidden states (all layers/dirs)
#   logits_ref : (Bb, K)
# ----------------------------------------------------------------------------
def _attn_fc_kernel(out_ref, hsum_ref, watt_t_ref, batt_ref, wfc_t_ref, bfc_ref,
                    logits_ref):
    H = hsum_ref.shape[-1]
    o2 = out_ref[...]                        # (Bb, S, 2H)
    o = o2[:, :, :H] + o2[:, :, H:]          # forward_out + backward_out -> (Bb, S, H)

    attn = jnp.dot(hsum_ref[...], watt_t_ref[...],
                   preferred_element_type=jnp.float32) + batt_ref[...]
    attn = jnp.maximum(attn, 0.0)            # Linear + ReLU -> (Bb, H)
    attn3 = attn.reshape(attn.shape[0], 1, H)

    # attention_context = attn . out^T  -> (Bb, 1, S), batched on the MXU
    scores = jnp.einsum('bqh,bsh->bqs', attn3, o,
                        preferred_element_type=jnp.float32)
    m = jnp.max(scores, axis=-1, keepdims=True)
    e = jnp.exp(scores - m)
    p = e / jnp.sum(e, axis=-1, keepdims=True)           # softmax over S

    ctx = jnp.einsum('bqs,bsh->bqh', p, o,
                     preferred_element_type=jnp.float32)[:, 0, :]        # (Bb, H)
    logits_ref[...] = (jnp.dot(ctx, wfc_t_ref[...],
                               preferred_element_type=jnp.float32) + bfc_ref[...])


def attn_fc(out_bs2h, h_sum, w_att, b_att, w_fc, b_fc, block_b=None):
    B, S, twoH = out_bs2h.shape
    H = twoH // 2
    K = w_fc.shape[0]
    if block_b is None:
        block_b = B if B <= 8 else 8
    assert B % block_b == 0
    return pl.pallas_call(
        _attn_fc_kernel,
        out_shape=jax.ShapeDtypeStruct((B, K), jnp.float32),
        grid=(B // block_b,),
        in_specs=[
            pl.BlockSpec((block_b, S, twoH), lambda b: (b, 0, 0)),
            pl.BlockSpec((block_b, H), lambda b: (b, 0)),
            pl.BlockSpec((H, H), lambda b: (0, 0)),
            pl.BlockSpec((1, H), lambda b: (0, 0)),
            pl.BlockSpec((H, K), lambda b: (0, 0)),
            pl.BlockSpec((1, K), lambda b: (0, 0)),
        ],
        out_specs=pl.BlockSpec((block_b, K), lambda b: (b, 0)),
        compiler_params=pltpu.CompilerParams(
            dimension_semantics=("parallel",),
            vmem_limit_bytes=32 * 1024 * 1024),
    )(out_bs2h, h_sum, w_att.T, b_att[None, :], w_fc.T, b_fc[None, :])


# ----------------------------------------------------------------------------
# Model wrapper: layer stacking + h_n summation (tiny glue only; no transposes,
# reversals, or concatenations of activations at the XLA level).
# ----------------------------------------------------------------------------
def robustlog_bi_forward(params, features, hidden_size, num_layers):
    x = features[0]                          # (B, S, D), batch-major
    B = x.shape[0]
    layer_in = x
    h_sum = jnp.zeros((B, hidden_size), jnp.float32)
    out = None
    for l in range(num_layers):
        pf = params["lstm"][l]["fwd"]
        pb = params["lstm"][l]["bwd"]
        wih = jnp.concatenate([pf["w_ih"].T, pb["w_ih"].T], axis=1)        # (Din, 8H)
        whh = jnp.concatenate([pf["w_hh"].T, pb["w_hh"].T], axis=1)        # (H, 8H)
        bias = jnp.concatenate([pf["b_ih"] + pf["b_hh"],
                                pb["b_ih"] + pb["b_hh"]])[None, :]         # (1, 8H)
        out, hn = bilstm_layer(layer_in, wih, whh, bias, hidden_size)
        h_sum = h_sum + hn[:, 0, :] + hn[:, 1, :]   # torch.sum(h_n.permute(1,0,2), dim=1)
        layer_in = out                              # (B, S, 2H): concat done in-kernel
    return attn_fc(out, h_sum, params["w_att"], params["b_att"],
                   params["w_fc"], params["b_fc"])


# ----------------------------------------------------------------------------
# Pure-JAX reference (same math, no Pallas) for correctness check
# ----------------------------------------------------------------------------
def _ref_lstm_dir(x, w_ih, w_hh, b, H):
    S, B, _ = x.shape
    h = jnp.zeros((B, H), jnp.float32)
    c = jnp.zeros((B, H), jnp.float32)
    outs = []
    for t in range(S):
        g = x[t] @ w_ih.T + h @ w_hh.T + b
        i = jax.nn.sigmoid(g[:, :H])
        f = jax.nn.sigmoid(g[:, H:2 * H])
        gg = jnp.tanh(g[:, 2 * H:3 * H])
        o = jax.nn.sigmoid(g[:, 3 * H:])
        c = f * c + i * gg
        h = o * jnp.tanh(c)
        outs.append(h)
    return jnp.stack(outs), h


def ref_forward(params, features, hidden_size, num_layers):
    x = jnp.transpose(features[0], (1, 0, 2))
    layer_in = x
    h_sum = jnp.zeros((x.shape[1], hidden_size), jnp.float32)
    out_f = out_b = None
    for l in range(num_layers):
        pf = params["lstm"][l]["fwd"]
        pb = params["lstm"][l]["bwd"]
        out_f, h_f = _ref_lstm_dir(layer_in, pf["w_ih"], pf["w_hh"],
                                   pf["b_ih"] + pf["b_hh"], hidden_size)
        out_b_rev, h_b = _ref_lstm_dir(layer_in[::-1], pb["w_ih"], pb["w_hh"],
                                       pb["b_ih"] + pb["b_hh"], hidden_size)
        out_b = out_b_rev[::-1]
        h_sum = h_sum + h_f + h_b
        layer_in = jnp.concatenate([out_f, out_b], axis=-1)
    out = jnp.transpose(out_f + out_b, (1, 0, 2))            # (B, S, H)
    attn = jnp.maximum(h_sum @ params["w_att"].T + params["b_att"], 0.0)
    scores = jnp.einsum("bh,bsh->bs", attn, out)
    p = jax.nn.softmax(scores, axis=-1)
    ctx = jnp.einsum("bs,bsh->bh", p, out)
    return ctx @ params["w_fc"].T + params["b_fc"]


# ----------------------------------------------------------------------------
# Deterministic parameter init (PyTorch-style uniform(-1/sqrt(H), 1/sqrt(H)))
# ----------------------------------------------------------------------------
def init_params(key, input_size, hidden_size, num_layers, num_keys):
    params = {"lstm": []}
    k = key
    std = 1.0 / float(hidden_size) ** 0.5
    for l in range(num_layers):
        d_in = input_size if l == 0 else 2 * hidden_size
        layer = {}
        for direction in ("fwd", "bwd"):
            k, k1, k2, k3, k4 = jax.random.split(k, 5)
            layer[direction] = dict(
                w_ih=jax.random.uniform(k1, (4 * hidden_size, d_in), jnp.float32, -std, std),
                w_hh=jax.random.uniform(k2, (4 * hidden_size, hidden_size), jnp.float32, -std, std),
                b_ih=jax.random.uniform(k3, (4 * hidden_size,), jnp.float32, -std, std),
                b_hh=jax.random.uniform(k4, (4 * hidden_size,), jnp.float32, -std, std),
            )
        params["lstm"].append(layer)
    k, k1, k2, k3, k4 = jax.random.split(k, 5)
    params["w_att"] = jax.random.uniform(k1, (hidden_size, hidden_size), jnp.float32, -std, std)
    params["b_att"] = jax.random.uniform(k2, (hidden_size,), jnp.float32, -std, std)
    params["w_fc"] = jax.random.uniform(k3, (num_keys, hidden_size), jnp.float32, -std, std)
    params["b_fc"] = jax.random.uniform(k4, (num_keys,), jnp.float32, -std, std)
    return params


if __name__ == "__main__":
    B, S = 2, 8
    input_size, hidden_size, num_layers, num_keys = 16, 32, 2, 8

    key = jax.random.PRNGKey(0)
    kx, kp = jax.random.split(key)
    x = jax.random.normal(kx, (B, S, input_size), jnp.float32)
    params = init_params(kp, input_size, hidden_size, num_layers, num_keys)

    features = [x]  # the module indexes features[0]

    logits = robustlog_bi_forward(params, features, hidden_size, num_layers)
    logits = jax.block_until_ready(logits)

    ref = jax.block_until_ready(ref_forward(params, features, hidden_size, num_layers))
    assert logits.shape == (B, num_keys)
    assert jnp.allclose(logits, ref, rtol=1e-4, atol=1e-4), (logits, ref)

    print("KERNEL_OK")
</pallas_src>

<mosaic_0001>
module attributes {stable_mosaic.version = 11 : i64} {
  func.func @_bilstm_layer_kernel(%arg0: i32, %arg1: memref<2x8x16xf32, #tpu.memory_space<vmem>>, %arg2: memref<16x256xf32, #tpu.memory_space<vmem>>, %arg3: memref<32x256xf32, #tpu.memory_space<vmem>>, %arg4: memref<1x256xf32, #tpu.memory_space<vmem>>, %arg5: memref<2x8x64xf32, #tpu.memory_space<vmem>>, %arg6: memref<2x2x32xf32, #tpu.memory_space<vmem>>, %arg7: memref<2x8x256xf32, #tpu.memory_space<vmem>>) attributes {dimension_semantics = [#tpu.dimension_semantics<parallel>], iteration_bounds = array<i64: 1>, scalar_prefetch = 0 : i64, scratch_operands = 1 : i64, tpu.core_type = #tpu.core_type<tc>, window_params = [{transform_indices = @transform_0, window_bounds = array<i64: 2, 8, 16>}, {pipeline_mode = #tpu.pipeline_mode<synchronous>, transform_indices = @transform_1, window_bounds = array<i64: 16, 256>}, {pipeline_mode = #tpu.pipeline_mode<synchronous>, transform_indices = @transform_2, window_bounds = array<i64: 32, 256>}, {pipeline_mode = #tpu.pipeline_mode<synchronous>, transform_indices = @transform_3, window_bounds = array<i64: 1, 256>}, {transform_indices = @transform_4, window_bounds = array<i64: 2, 8, 64>}, {transform_indices = @transform_5, window_bounds = array<i64: 2, 2, 32>}]} {
    %c0 = arith.constant 0 : index
    %c0_0 = arith.constant 0 : index
    %c0_1 = arith.constant 0 : index
    %0 = vector.load %arg1[%c0, %c0_0, %c0_1] : memref<2x8x16xf32, #tpu.memory_space<vmem>>, vector<2x8x16xf32>
    %1 = vector.shape_cast %0 : vector<2x8x16xf32> to vector<16x16xf32>
    %c0_2 = arith.constant 0 : index
    %c0_3 = arith.constant 0 : index
    %2 = vector.load %arg2[%c0_2, %c0_3] : memref<16x256xf32, #tpu.memory_space<vmem>>, vector<16x256xf32>
    %cst = arith.constant dense<0.000000e+00> : vector<16x256xf32>
    %3 = tpu.matmul %1, %2, %cst {dimension_numbers = #tpu.dot_dimension_numbers<[1], [0], [0], [1], [0, 0, 1, 1], [], []>} : vector<16x16xf32>, vector<16x256xf32>, vector<16x256xf32> -> vector<16x256xf32>
    %c0_4 = arith.constant 0 : index
    %c0_5 = arith.constant 0 : index
    %4 = vector.load %arg4[%c0_4, %c0_5] : memref<1x256xf32, #tpu.memory_space<vmem>>, vector<1x256xf32>
    %5 = vector.broadcast %4 : vector<1x256xf32> to vector<16x256xf32>
    %6 = arith.addf %3, %5 : vector<16x256xf32>
    %7 = vector.shape_cast %6 : vector<16x256xf32> to vector<2x8x256xf32>
    %c0_6 = arith.constant 0 : index
    %c0_7 = arith.constant 0 : index
    %c0_8 = arith.constant 0 : index
    %8 = vector.load %arg7[%c0_6, %c0_7, %c0_8] : memref<2x8x256xf32, #tpu.memory_space<vmem>>, vector<2x8x256xf32>
    tpu.vector_store %arg7[%c0_6, %c0_7, %c0_8], %7 {strides = array<i32>} : memref<2x8x256xf32, #tpu.memory_space<vmem>>, vector<2x8x256xf32>,
    %c0_9 = arith.constant 0 : index
    %c0_10 = arith.constant 0 : index
    %9 = vector.load %arg3[%c0_9, %c0_10] : memref<32x256xf32, #tpu.memory_space<vmem>>, vector<32x256xf32>
    %10 = vector.extract_strided_slice %9 {offsets = [0, 0], sizes = [32, 128], strides = [1, 1]} : vector<32x256xf32> to vector<32x128xf32>
    %11 = vector.extract_strided_slice %9 {offsets = [0, 128], sizes = [32, 128], strides = [1, 1]} : vector<32x256xf32> to vector<32x128xf32>
    %cst_11 = arith.constant 0.000000e+00 : f32
    %12 = vector.broadcast %cst_11 : f32 to vector<2x32xf32>
    %c0_12 = arith.constant 0 : index
    %c0_13 = arith.constant 0 : index
    %c0_14 = arith.constant 0 : index
    %13 = vector.load %arg7[%c0_12, %c0_13, %c0_14] : memref<2x8x256xf32, #tpu.memory_space<vmem>>, vector<2x1x128xf32>
    %14 = vector.shape_cast %13 : vector<2x1x128xf32> to vector<2x128xf32>
    %cst_15 = arith.constant dense<0.000000e+00> : vector<2x128xf32>
    %15 = tpu.matmul %12, %10, %cst_15 {dimension_numbers = #tpu.dot_dimension_numbers<[1], [0], [0], [1], [0, 0, 1, 1], [], []>} : vector<2x32xf32>, vector<32x128xf32>, vector<2x128xf32> -> vector<2x128xf32>
    %16 = arith.addf %14, %15 : vector<2x128xf32>
    %c0_16 = arith.constant 0 : index
    %c7 = arith.constant 7 : index
    %c128 = arith.constant 128 : index
    %17 = vector.load %arg7[%c0_16, %c7, %c128] : memref<2x8x256xf32, #tpu.memory_space<vmem>>, vector<2x1x128xf32>
    %18 = vector.shape_cast %17 : vector<2x1x128xf32> to vector<2x128xf32>
    %cst_17 = arith.constant dense<0.000000e+00> : vector<2x128xf32>
    %19 = tpu.matmul %12, %11, %cst_17 {dimension_numbers = #tpu.dot_dimension_numbers<[1], [0], [0], [1], [0, 0, 1, 1], [], []>} : vector<2x32xf32>, vector<32x128xf32>, vector<2x128xf32> -> vector<2x128xf32>
    %20 = arith.addf %18, %19 : vector<2x128xf32>
    %21 = vector.extract_strided_slice %16 {offsets = [0, 0], sizes = [2, 32], strides = [1, 1]} : vector<2x128xf32> to vector<2x32xf32>
    %22 = arith.negf %21 : vector<2x32xf32>
    %23 = math.exp %22 : vector<2x32xf32>
    %cst_18 = arith.constant 1.000000e+00 : f32
    %24 = vector.broadcast %cst_18 : f32 to vector<2x32xf32>
    %25 = arith.addf %24, %23 : vector<2x32xf32>
    %26 = arith.divf %24, %25 : vector<2x32xf32>
    %27 = vector.extract_strided_slice %16 {offsets = [0, 32], sizes = [2, 32], strides = [1, 1]} : vector<2x128xf32> to vector<2x32xf32>
    %28 = arith.negf %27 : vector<2x32xf32>
    %29 = math.exp %28 : vector<2x32xf32>
    %cst_19 = arith.constant 1.000000e+00 : f32
    %30 = vector.broadcast %cst_19 : f32 to vector<2x32xf32>
    %31 = arith.addf %30, %29 : vector<2x32xf32>
    %32 = arith.divf %30, %31 : vector<2x32xf32>
    %33 = vector.extract_strided_slice %16 {offsets = [0, 64], sizes = [2, 32], strides = [1, 1]} : vector<2x128xf32> to vector<2x32xf32>
    %34 = math.tanh %33 : vector<2x32xf32>
    %35 = vector.extract_strided_slice %16 {offsets = [0, 96], sizes = [2, 32], strides = [1, 1]} : vector<2x128xf32> to vector<2x32xf32>
    %36 = arith.negf %35 : vector<2x32xf32>
    %37 = math.exp %36 : vector<2x32xf32>
    %cst_20 = arith.constant 1.000000e+00 : f32
    %38 = vector.broadcast %cst_20 : f32 to vector<2x32xf32>
    %39 = arith.addf %38, %37 : vector<2x32xf32>
    %40 = arith.divf %38, %39 : vector<2x32xf32>
    %41 = arith.mulf %32, %12 : vector<2x32xf32>
    %42 = arith.mulf %26, %34 : vector<2x32xf32>
    %43 = arith.addf %41, %42 : vector<2x32xf32>
    %44 = math.tanh %43 : vector<2x32xf32>
    %45 = arith.mulf %40, %44 : vector<2x32xf32>
    %46 = vector.extract_strided_slice %20 {offsets = [0, 0], sizes = [2, 32], strides = [1, 1]} : vector<2x128xf32> to vector<2x32xf32>
    %47 = arith.negf %46 : vector<2x32xf32>
    %48 = math.exp %47 : vector<2x32xf32>
    %cst_21 = arith.constant 1.000000e+00 : f32
    %49 = vector.broadcast %cst_21 : f32 to vector<2x32xf32>
    %50 = arith.addf %49, %48 : vector<2x32xf32>
    %51 = arith.divf %49, %50 : vector<2x32xf32>
    %52 = vector.extract_strided_slice %20 {offsets = [0, 32], sizes = [2, 32], strides = [1, 1]} : vector<2x128xf32> to vector<2x32xf32>
    %53 = arith.negf %52 : vector<2x32xf32>
    %54 = math.exp %53 : vector<2x32xf32>
    %cst_22 = arith.constant 1.000000e+00 : f32
    %55 = vector.broadcast %cst_22 : f32 to vector<2x32xf32>
    %56 = arith.addf %55, %54 : vector<2x32xf32>
    %57 = arith.divf %55, %56 : vector<2x32xf32>
    %58 = vector.extract_strided_slice %20 {offsets = [0, 64], sizes = [2, 32], strides = [1, 1]} : vector<2x128xf32> to vector<2x32xf32>
    %59 = math.tanh %58 : vector<2x32xf32>
    %60 = vector.extract_strided_slice %20 {offsets = [0, 96], sizes = [2, 32], strides = [1, 1]} : vector<2x128xf32> to vector<2x32xf32>
    %61 = arith.negf %60 : vector<2x32xf32>
    %62 = math.exp %61 : vector<2x32xf32>
    %cst_23 = arith.constant 1.000000e+00 : f32
    %63 = vector.broadcast %cst_23 : f32 to vector<2x32xf32>
    %64 = arith.addf %63, %62 : vector<2x32xf32>
    %65 = arith.divf %63, %64 : vector<2x32xf32>
    %66 = arith.mulf %57, %12 : vector<2x32xf32>
    %67 = arith.mulf %51, %59 : vector<2x32xf32>
    %68 = arith.addf %66, %67 : vector<2x32xf32>
    %69 = math.tanh %68 : vector<2x32xf32>
    %70 = arith.mulf %65, %69 : vector<2x32xf32>
    %c0_24 = arith.constant 0 : index
    %c0_25 = arith.constant 0 : index
    %c0_26 = arith.constant 0 : index
    %71 = vector.load %arg5[%c0_24, %c0_25, %c0_26] : memref<2x8x64xf32, #tpu.memory_space<vmem>>, vector<2x1x32xf32>
    %72 = vector.shape_cast %71 : vector<2x1x32xf32> to vector<2x32xf32>
    %73 = vector.shape_cast %45 : vector<2x32xf32> to vector<2x1x32xf32>
    tpu.vector_store %arg5[%c0_24, %c0_25, %c0_26], %73 {strides = array<i32>} : memref<2x8x64xf32, #tpu.memory_space<vmem>>, vector<2x1x32xf32>,
    %c0_27 = arith.constant 0 : index
    %c7_28 = arith.constant 7 : index
    %c32 = arith.constant 32 : index
    %74 = vector.load %arg5[%c0_27, %c7_28, %c32] : memref<2x8x64xf32, #tpu.memory_space<vmem>>, vector<2x1x32xf32>
    %75 = vector.shape_cast %74 : vector<2x1x32xf32> to vector<2x32xf32>
    %76 = vector.shape_cast %70 : vector<2x32xf32> to vector<2x1x32xf32>
    tpu.vector_store %arg5[%c0_27, %c7_28, %c32], %76 {strides = array<i32>} : memref<2x8x64xf32, #tpu.memory_space<vmem>>, vector<2x1x32xf32>,
    %c0_29 = arith.constant 0 : index
    %c1 = arith.constant 1 : index
    %c0_30 = arith.constant 0 : index
    %77 = vector.load %arg7[%c0_29, %c1, %c0_30] : memref<2x8x256xf32, #tpu.memory_space<vmem>>, vector<2x1x128xf32>
    %78 = vector.shape_cast %77 : vector<2x1x128xf32> to vector<2x128xf32>
    %cst_31 = arith.constant dense<0.000000e+00> : vector<2x128xf32>
    %79 = tpu.matmul %45, %10, %cst_31 {dimension_numbers = #tpu.dot_dimension_numbers<[1], [0], [0], [1], [0, 0, 1, 1], [], []>} : vector<2x32xf32>, vector<32x128xf32>, vector<2x128xf32> -> vector<2x128xf32>
    %80 = arith.addf %78, %79 : vector<2x128xf32>
    %c0_32 = arith.constant 0 : index
    %c6 = arith.constant 6 : index
    %c128_33 = arith.constant 128 : index
    %81 = vector.load %arg7[%c0_32, %c6, %c128_33] : memref<2x8x256xf32, #tpu.memory_space<vmem>>, vector<2x1x128xf32>
    %82 = vector.shape_cast %81 : vector<2x1x128xf32> to vector<2x128xf32>
    %cst_34 = arith.constant dense<0.000000e+00> : vector<2x128xf32>
    %83 = tpu.matmul %70, %11, %cst_34 {dimension_numbers = #tpu.dot_dimension_numbers<[1], [0], [0], [1], [0, 0, 1, 1], [], []>} : vector<2x32xf32>, vector<32x128xf32>, vector<2x128xf32> -> vector<2x128xf32>
    %84 = arith.addf %82, %83 : vector<2x128xf32>
    %85 = vector.extract_strided_slice %80 {offsets = [0, 0], sizes = [2, 32], strides = [1, 1]} : vector<2x128xf32> to vector<2x32xf32>
    %86 = arith.negf %85 : vector<2x32xf32>
    %87 = math.exp %86 : vector<2x32xf32>
    %cst_35 = arith.constant 1.000000e+00 : f32
    %88 = vector.broadcast %cst_35 : f32 to vector<2x32xf32>
    %89 = arith.addf %88, %87 : vector<2x32xf32>
    %90 = arith.divf %88, %89 : vector<2x32xf32>
    %91 = vector.extract_strided_slice %80 {offsets = [0, 32], sizes = [2, 32], strides = [1, 1]} : vector<2x128xf32> to vector<2x32xf32>
    %92 = arith.negf %91 : vector<2x32xf32>
    %93 = math.exp %92 : vector<2x32xf32>
    %cst_36 = arith.constant 1.000000e+00 : f32
    %94 = vector.broadcast %cst_36 : f32 to vector<2x32xf32>
    %95 = arith.addf %94, %93 : vector<2x32xf32>
    %96 = arith.divf %94, %95 : vector<2x32xf32>
    %97 = vector.extract_strided_slice %80 {offsets = [0, 64], sizes = [2, 32], strides = [1, 1]} : vector<2x128xf32> to vector<2x32xf32>
    %98 = math.tanh %97 : vector<2x32xf32>
    %99 = vector.extract_strided_slice %80 {offsets = [0, 96], sizes = [2, 32], strides = [1, 1]} : vector<2x128xf32> to vector<2x32xf32>
    %100 = arith.negf %99 : vector<2x32xf32>
    %101 = math.exp %100 : vector<2x32xf32>
    %cst_37 = arith.constant 1.000000e+00 : f32
    %102 = vector.broadcast %cst_37 : f32 to vector<2x32xf32>
    %103 = arith.addf %102, %101 : vector<2x32xf32>
    %104 = arith.divf %102, %103 : vector<2x32xf32>
    %105 = arith.mulf %96, %43 : vector<2x32xf32>
    %106 = arith.mulf %90, %98 : vector<2x32xf32>
    %107 = arith.addf %105, %106 : vector<2x32xf32>
    %108 = math.tanh %107 : vector<2x32xf32>
    %109 = arith.mulf %104, %108 : vector<2x32xf32>
    %110 = vector.extract_strided_slice %84 {offsets = [0, 0], sizes = [2, 32], strides = [1, 1]} : vector<2x128xf32> to vector<2x32xf32>
    %111 = arith.negf %110 : vector<2x32xf32>
    %112 = math.exp %111 : vector<2x32xf32>
    %cst_38 = arith.constant 1.000000e+00 : f32
    %113 = vector.broadcast %cst_38 : f32 to vector<2x32xf32>
    %114 = arith.addf %113, %112 : vector<2x32xf32>
    %115 = arith.divf %113, %114 : vector<2x32xf32>
    %116 = vector.extract_strided_slice %84 {offsets = [0, 32], sizes = [2, 32], strides = [1, 1]} : vector<2x128xf32> to vector<2x32xf32>
    %117 = arith.negf %116 : vector<2x32xf32>
    %118 = math.exp %117 : vector<2x32xf32>
    %cst_39 = arith.constant 1.000000e+00 : f32
    %119 = vector.broadcast %cst_39 : f32 to vector<2x32xf32>
    %120 = arith.addf %119, %118 : vector<2x32xf32>
    %121 = arith.divf %119, %120 : vector<2x32xf32>
    %122 = vector.extract_strided_slice %84 {offsets = [0, 64], sizes = [2, 32], strides = [1, 1]} : vector<2x128xf32> to vector<2x32xf32>
    %123 = math.tanh %122 : vector<2x32xf32>
    %124 = vector.extract_strided_slice %84 {offsets = [0, 96], sizes = [2, 32], strides = [1, 1]} : vector<2x128xf32> to vector<2x32xf32>
    %125 = arith.negf %124 : vector<2x32xf32>
    %126 = math.exp %125 : vector<2x32xf32>
    %cst_40 = arith.constant 1.000000e+00 : f32
    %127 = vector.broadcast %cst_40 : f32 to vector<2x32xf32>
    %128 = arith.addf %127, %126 : vector<2x32xf32>
    %129 = arith.divf %127, %128 : vector<2x32xf32>
    %130 = arith.mulf %121, %68 : vector<2x32xf32>
    %131 = arith.mulf %115, %123 : vector<2x32xf32>
    %132 = arith.addf %130, %131 : vector<2x32xf32>
    %133 = math.tanh %132 : vector<2x32xf32>
    %134 = arith.mulf %129, %133 : vector<2x32xf32>
    %c0_41 = arith.constant 0 : index
    %c1_42 = arith.constant 1 : index
    %c0_43 = arith.constant 0 : index
    %135 = vector.load %arg5[%c0_41, %c1_42, %c0_43] : memref<2x8x64xf32, #tpu.memory_space<vmem>>, vector<2x1x32xf32>
    %136 = vector.shape_cast %135 : vector<2x1x32xf32> to vector<2x32xf32>
    %137 = vector.shape_cast %109 : vector<2x32xf32> to vector<2x1x32xf32>
    tpu.vector_store %arg5[%c0_41, %c1_42, %c0_43], %137 {strides = array<i32>} : memref<2x8x64xf32, #tpu.memory_space<vmem>>, vector<2x1x32xf32>,
    %c0_44 = arith.constant 0 : index
    %c6_45 = arith.constant 6 : index
    %c32_46 = arith.constant 32 : index
    %138 = vector.load %arg5[%c0_44, %c6_45, %c32_46] : memref<2x8x64xf32, #tpu.memory_space<vmem>>, vector<2x1x32xf32>
    %139 = vector.shape_cast %138 : vector<2x1x32xf32> to vector<2x32xf32>
    %140 = vector.shape_cast %134 : vector<2x32xf32> to vector<2x1x32xf32>
    tpu.vector_store %arg5[%c0_44, %c6_45, %c32_46], %140 {strides = array<i32>} : memref<2x8x64xf32, #tpu.memory_space<vmem>>, vector<2x1x32xf32>,
    %c0_47 = arith.constant 0 : index
    %c2 = arith.constant 2 : index
    %c0_48 = arith.constant 0 : index
    %141 = vector.load %arg7[%c0_47, %c2, %c0_48] : memref<2x8x256xf32, #tpu.memory_space<vmem>>, vector<2x1x128xf32>
    %142 = vector.shape_cast %141 : vector<2x1x128xf32> to vector<2x128xf32>
    %cst_49 = arith.constant dense<0.000000e+00> : vector<2x128xf32>
    %143 = tpu.matmul %109, %10, %cst_49 {dimension_numbers = #tpu.dot_dimension_numbers<[1], [0], [0], [1], [0, 0, 1, 1], [], []>} : vector<2x32xf32>, vector<32x128xf32>, vector<2x128xf32> -> vector<2x128xf32>
    %144 = arith.addf %142, %143 : vector<2x128xf32>
    %c0_50 = arith.constant 0 : index
    %c5 = arith.constant 5 : index
    %c128_51 = arith.constant 128 : index
    %145 = vector.load %arg7[%c0_50, %c5, %c128_51] : memref<2x8x256xf32, #tpu.memory_space<vmem>>, vector<2x1x128xf32>
    %146 = vector.shape_cast %145 : vector<2x1x128xf32> to vector<2x128xf32>
    %cst_52 = arith.constant dense<0.000000e+00> : vector<2x128xf32>
    %147 = tpu.matmul %134, %11, %cst_52 {dimension_numbers = #tpu.dot_dimension_numbers<[1], [0], [0], [1], [0, 0, 1, 1], [], []>} : vector<2x32xf32>, vector<32x128xf32>, vector<2x128xf32> -> vector<2x128xf32>
    %148 = arith.addf %146, %147 : vector<2x128xf32>
    %149 = vector.extract_strided_slice %144 {offsets = [0, 0], sizes = [2, 32], strides = [1, 1]} : vector<2x128xf32> to vector<2x32xf32>
    %150 = arith.negf %149 : vector<2x32xf32>
    %151 = math.exp %150 : vector<2x32xf32>
    %cst_53 = arith.constant 1.000000e+00 : f32
    %152 = vector.broadcast %cst_53 : f32 to vector<2x32xf32>
    %153 = arith.addf %152, %151 : vector<2x32xf32>
    %154 = arith.divf %152, %153 : vector<2x32xf32>
    %155 = vector.extract_strided_slice %144 {offsets = [0, 32], sizes = [2, 32], strides = [1, 1]} : vector<2x128xf32> to vector<2x32xf32>
    %156 = arith.negf %155 : vector<2x32xf32>
    %157 = math.exp %156 : vector<2x32xf32>
    %cst_54 = arith.constant 1.000000e+00 : f32
    %158 = vector.broadcast %cst_54 : f32 to vector<2x32xf32>
    %159 = arith.addf %158, %157 : vector<2x32xf32>
    %160 = arith.divf %158, %159 : vector<2x32xf32>
    %161 = vector.extract_strided_slice %144 {offsets = [0, 64], sizes = [2, 32], strides = [1, 1]} : vector<2x128xf32> to vector<2x32xf32>
    %162 = math.tanh %161 : vector<2x32xf32>
    %163 = vector.extract_strided_slice %144 {offsets = [0, 96], sizes = [2, 32], strides = [1, 1]} : vector<2x128xf32> to vector<2x32xf32>
    %164 = arith.negf %163 : vector<2x32xf32>
    %165 = math.exp %164 : vector<2x32xf32>
    %cst_55 = arith.constant 1.000000e+00 : f32
    %166 = vector.broadcast %cst_55 : f32 to vector<2x32xf32>
    %167 = arith.addf %166, %165 : vector<2x32xf32>
    %168 = arith.divf %166, %167 : vector<2x32xf32>
    %169 = arith.mulf %160, %107 : vector<2x32xf32>
    %170 = arith.mulf %154, %162 : vector<2x32xf32>
    %171 = arith.addf %169, %170 : vector<2x32xf32>
    %172 = math.tanh %171 : vector<2x32xf32>
    %173 = arith.mulf %168, %172 : vector<2x32xf32>
    %174 = vector.extract_strided_slice %148 {offsets = [0, 0], sizes = [2, 32], strides = [1, 1]} : vector<2x128xf32> to vector<2x32xf32>
    %175 = arith.negf %174 : vector<2x32xf32>
    %176 = math.exp %175 : vector<2x32xf32>
    %cst_56 = arith.constant 1.000000e+00 : f32
    %177 = vector.broadcast %cst_56 : f32 to vector<2x32xf32>
    %178 = arith.addf %177, %176 : vector<2x32xf32>
    %179 = arith.divf %177, %178 : vector<2x32xf32>
    %180 = vector.extract_strided_slice %148 {offsets = [0, 32], sizes = [2, 32], strides = [1, 1]} : vector<2x128xf32> to vector<2x32xf32>
    %181 = arith.negf %180 : vector<2x32xf32>
    %182 = math.exp %181 : vector<2x32xf32>
    %cst_57 = arith.constant 1.000000e+00 : f32
    %183 = vector.broadcast %cst_57 : f32 to vector<2x32xf32>
    %184 = arith.addf %183, %182 : vector<2x32xf32>
    %185 = arith.divf %183, %184 : vector<2x32xf32>
    %186 = vector.extract_strided_slice %148 {offsets = [0, 64], sizes = [2, 32], strides = [1, 1]} : vector<2x128xf32> to vector<2x32xf32>
    %187 = math.tanh %186 : vector<2x32xf32>
    %188 = vector.extract_strided_slice %148 {offsets = [0, 96], sizes = [2, 32], strides = [1, 1]} : vector<2x128xf32> to vector<2x32xf32>
    %189 = arith.negf %188 : vector<2x32xf32>
    %190 = math.exp %189 : vector<2x32xf32>
    %cst_58 = arith.constant 1.000000e+00 : f32
    %191 = vector.broadcast %cst_58 : f32 to vector<2x32xf32>
    %192 = arith.addf %191, %190 : vector<2x32xf32>
    %193 = arith.divf %191, %192 : vector<2x32xf32>
    %194 = arith.mulf %185, %132 : vector<2x32xf32>
    %195 = arith.mulf %179, %187 : vector<2x32xf32>
    %196 = arith.addf %194, %195 : vector<2x32xf32>
    %197 = math.tanh %196 : vector<2x32xf32>
    %198 = arith.mulf %193, %197 : vector<2x32xf32>
    %c0_59 = arith.constant 0 : index
    %c2_60 = arith.constant 2 : index
    %c0_61 = arith.constant 0 : index
    %199 = vector.load %arg5[%c0_59, %c2_60, %c0_61] : memref<2x8x64xf32, #tpu.memory_space<vmem>>, vector<2x1x32xf32>
    %200 = vector.shape_cast %199 : vector<2x1x32xf32> to vector<2x32xf32>
    %201 = vector.shape_cast %173 : vector<2x32xf32> to vector<2x1x32xf32>
    tpu.vector_store %arg5[%c0_59, %c2_60, %c0_61], %201 {strides = array<i32>} : memref<2x8x64xf32, #tpu.memory_space<vmem>>, vector<2x1x32xf32>,
    %c0_62 = arith.constant 0 : index
    %c5_63 = arith.constant 5 : index
    %c32_64 = arith.constant 32 : index
    %202 = vector.load %arg5[%c0_62, %c5_63, %c32_64] : memref<2x8x64xf32, #tpu.memory_space<vmem>>, vector<2x1x32xf32>
    %203 = vector.shape_cast %202 : vector<2x1x32xf32> to vector<2x32xf32>
    %204 = vector.shape_cast %198 : vector<2x32xf32> to vector<2x1x32xf32>
    tpu.vector_store %arg5[%c0_62, %c5_63, %c32_64], %204 {strides = array<i32>} : memref<2x8x64xf32, #tpu.memory_space<vmem>>, vector<2x1x32xf32>,
    %c0_65 = arith.constant 0 : index
    %c3 = arith.constant 3 : index
    %c0_66 = arith.constant 0 : index
    %205 = vector.load %arg7[%c0_65, %c3, %c0_66] : memref<2x8x256xf32, #tpu.memory_space<vmem>>, vector<2x1x128xf32>
    %206 = vector.shape_cast %205 : vector<2x1x128xf32> to vector<2x128xf32>
    %cst_67 = arith.constant dense<0.000000e+00> : vector<2x128xf32>
    %207 = tpu.matmul %173, %10, %cst_67 {dimension_numbers = #tpu.dot_dimension_numbers<[1], [0], [0], [1], [0, 0, 1, 1], [], []>} : vector<2x32xf32>, vector<32x128xf32>, vector<2x128xf32> -> vector<2x128xf32>
    %208 = arith.addf %206, %207 : vector<2x128xf32>
    %c0_68 = arith.constant 0 : index
    %c4 = arith.constant 4 : index
    %c128_69 = arith.constant 128 : index
    %209 = vector.load %arg7[%c0_68, %c4, %c128_69] : memref<2x8x256xf32, #tpu.memory_space<vmem>>, vector<2x1x128xf32>
    %210 = vector.shape_cast %209 : vector<2x1x128xf32> to vector<2x128xf32>
    %cst_70 = arith.constant dense<0.000000e+00> : vector<2x128xf32>
    %211 = tpu.matmul %198, %11, %cst_70 {dimension_numbers = #tpu.dot_dimension_numbers<[1], [0], [0], [1], [0, 0, 1, 1], [], []>} : vector<2x32xf32>, vector<32x128xf32>, vector<2x128xf32> -> vector<2x128xf32>
    %212 = arith.addf %210, %211 : vector<2x128xf32>
    %213 = vector.extract_strided_slice %208 {offsets = [0, 0], sizes = [2, 32], strides = [1, 1]} : vector<2x128xf32> to vector<2x32xf32>
    %214 = arith.negf %213 : vector<2x32xf32>
    %215 = math.exp %214 : vector<2x32xf32>
    %cst_71 = arith.constant 1.000000e+00 : f32
    %216 = vector.broadcast %cst_71 : f32 to vector<2x32xf32>
    %217 = arith.addf %216, %215 : vector<2x32xf32>
    %218 = arith.divf %216, %217 : vector<2x32xf32>
    %219 = vector.extract_strided_slice %208 {offsets = [0, 32], sizes = [2, 32], strides = [1, 1]} : vector<2x128xf32> to vector<2x32xf32>
    %220 = arith.negf %219 : vector<2x32xf32>
    %221 = math.exp %220 : vector<2x32xf32>
    %cst_72 = arith.constant 1.000000e+00 : f32
    %222 = vector.broadcast %cst_72 : f32 to vector<2x32xf32>
    %223 = arith.addf %222, %221 : vector<2x32xf32>
    %224 = arith.divf %222, %223 : vector<2x32xf32>
    %225 = vector.extract_strided_slice %208 {offsets = [0, 64], sizes = [2, 32], strides = [1, 1]} : vector<2x128xf32> to vector<2x32xf32>
    %226 = math.tanh %225 : vector<2x32xf32>
    %227 = vector.extract_strided_slice %208 {offsets = [0, 96], sizes = [2, 32], strides = [1, 1]} : vector<2x128xf32> to vector<2x32xf32>
    %228 = arith.negf %227 : vector<2x32xf32>
    %229 = math.exp %228 : vector<2x32xf32>
    %cst_73 = arith.constant 1.000000e+00 : f32
    %230 = vector.broadcast %cst_73 : f32 to vector<2x32xf32>
    %231 = arith.addf %230, %229 : vector<2x32xf32>
    %232 = arith.divf %230, %231 : vector<2x32xf32>
    %233 = arith.mulf %224, %171 : vector<2x32xf32>
    %234 = arith.mulf %218, %226 : vector<2x32xf32>
    %235 = arith.addf %233, %234 : vector<2x32xf32>
    %236 = math.tanh %235 : vector<2x32xf32>
    %237 = arith.mulf %232, %236 : vector<2x32xf32>
    %238 = vector.extract_strided_slice %212 {offsets = [0, 0], sizes = [2, 32], strides = [1, 1]} : vector<2x128xf32> to vector<2x32xf32>
    %239 = arith.negf %238 : vector<2x32xf32>
    %240 = math.exp %239 : vector<2x32xf32>
    %cst_74 = arith.constant 1.000000e+00 : f32
    %241 = vector.broadcast %cst_74 : f32 to vector<2x32xf32>
    %242 = arith.addf %241, %240 : vector<2x32xf32>
    %243 = arith.divf %241, %242 : vector<2x32xf32>
    %244 = vector.extract_strided_slice %212 {offsets = [0, 32], sizes = [2, 32], strides = [1, 1]} : vector<2x128xf32> to vector<2x32xf32>
    %245 = arith.negf %244 : vector<2x32xf32>
    %246 = math.exp %245 : vector<2x32xf32>
    %cst_75 = arith.constant 1.000000e+00 : f32
    %247 = vector.broadcast %cst_75 : f32 to vector<2x32xf32>
    %248 = arith.addf %247, %246 : vector<2x32xf32>
    %249 = arith.divf %247, %248 : vector<2x32xf32>
    %250 = vector.extract_strided_slice %212 {offsets = [0, 64], sizes = [2, 32], strides = [1, 1]} : vector<2x128xf32> to vector<2x32xf32>
    %251 = math.tanh %250 : vector<2x32xf32>
    %252 = vector.extract_strided_slice %212 {offsets = [0, 96], sizes = [2, 32], strides = [1, 1]} : vector<2x128xf32> to vector<2x32xf32>
    %253 = arith.negf %252 : vector<2x32xf32>
    %254 = math.exp %253 : vector<2x32xf32>
    %cst_76 = arith.constant 1.000000e+00 : f32
    %255 = vector.broadcast %cst_76 : f32 to vector<2x32xf32>
    %256 = arith.addf %255, %254 : vector<2x32xf32>
    %257 = arith.divf %255, %256 : vector<2x32xf32>
    %258 = arith.mulf %249, %196 : vector<2x32xf32>
    %259 = arith.mulf %243, %251 : vector<2x32xf32>
    %260 = arith.addf %258, %259 : vector<2x32xf32>
    %261 = math.tanh %260 : vector<2x32xf32>
    %262 = arith.mulf %257, %261 : vector<2x32xf32>
    %c0_77 = arith.constant 0 : index
    %c3_78 = arith.constant 3 : index
    %c0_79 = arith.constant 0 : index
    %263 = vector.load %arg5[%c0_77, %c3_78, %c0_79] : memref<2x8x64xf32, #tpu.memory_space<vmem>>, vector<2x1x32xf32>
    %264 = vector.shape_cast %263 : vector<2x1x32xf32> to vector<2x32xf32>
    %265 = vector.shape_cast %237 : vector<2x32xf32> to vector<2x1x32xf32>
    tpu.vector_store %arg5[%c0_77, %c3_78, %c0_79], %265 {strides = array<i32>} : memref<2x8x64xf32, #tpu.memory_space<vmem>>, vector<2x1x32xf32>,
    %c0_80 = arith.constant 0 : index
    %c4_81 = arith.constant 4 : index
    %c32_82 = arith.constant 32 : index
    %266 = vector.load %arg5[%c0_80, %c4_81, %c32_82] : memref<2x8x64xf32, #tpu.memory_space<vmem>>, vector<2x1x32xf32>
    %267 = vector.shape_cast %266 : vector<2x1x32xf32> to vector<2x32xf32>
    %268 = vector.shape_cast %262 : vector<2x32xf32> to vector<2x1x32xf32>
    tpu.vector_store %arg5[%c0_80, %c4_81, %c32_82], %268 {strides = array<i32>} : memref<2x8x64xf32, #tpu.memory_space<vmem>>, vector<2x1x32xf32>,
    %c0_83 = arith.constant 0 : index
    %c4_84 = arith.constant 4 : index
    %c0_85 = arith.constant 0 : index
    %269 = vector.load %arg7[%c0_83, %c4_84, %c0_85] : memref<2x8x256xf32, #tpu.memory_space<vmem>>, vector<2x1x128xf32>
    %270 = vector.shape_cast %269 : vector<2x1x128xf32> to vector<2x128xf32>
    %cst_86 = arith.constant dense<0.000000e+00> : vector<2x128xf32>
    %271 = tpu.matmul %237, %10, %cst_86 {dimension_numbers = #tpu.dot_dimension_numbers<[1], [0], [0], [1], [0, 0, 1, 1], [], []>} : vector<2x32xf32>, vector<32x128xf32>, vector<2x128xf32> -> vector<2x128xf32>
    %272 = arith.addf %270, %271 : vector<2x128xf32>
    %c0_87 = arith.constant 0 : index
    %c3_88 = arith.constant 3 : index
    %c128_89 = arith.constant 128 : index
    %273 = vector.load %arg7[%c0_87, %c3_88, %c128_89] : memref<2x8x256xf32, #tpu.memory_space<vmem>>, vector<2x1x128xf32>
    %274 = vector.shape_cast %273 : vector<2x1x128xf32> to vector<2x128xf32>
    %cst_90 = arith.constant dense<0.000000e+00> : vector<2x128xf32>
    %275 = tpu.matmul %262, %11, %cst_90 {dimension_numbers = #tpu.dot_dimension_numbers<[1], [0], [0], [1], [0, 0, 1, 1], [], []>} : vector<2x32xf32>, vector<32x128xf32>, vector<2x128xf32> -> vector<2x128xf32>
    %276 = arith.addf %274, %275 : vector<2x128xf32>
    %277 = vector.extract_strided_slice %272 {offsets = [0, 0], sizes = [2, 32], strides = [1, 1]} : vector<2x128xf32> to vector<2x32xf32>
    %278 = arith.negf %277 : vector<2x32xf32>
    %279 = math.exp %278 : vector<2x32xf32>
    %cst_91 = arith.constant 1.000000e+00 : f32
    %280 = vector.broadcast %cst_91 : f32 to vector<2x32xf32>
    %281 = arith.addf %280, %279 : vector<2x32xf32>
    %282 = arith.divf %280, %281 : vector<2x32xf32>
    %283 = vector.extract_strided_slice %272 {offsets = [0, 32], sizes = [2, 32], strides = [1, 1]} : vector<2x128xf32> to vector<2x32xf32>
    %284 = arith.negf %283 : vector<2x32xf32>
    %285 = math.exp %284 : vector<2x32xf32>
    %cst_92 = arith.constant 1.000000e+00 : f32
    %286 = vector.broadcast %cst_92 : f32 to vector<2x32xf32>
    %287 = arith.addf %286, %285 : vector<2x32xf32>
    %288 = arith.divf %286, %287 : vector<2x32xf32>
    %289 = vector.extract_strided_slice %272 {offsets = [0, 64], sizes = [2, 32], strides = [1, 1]} : vector<2x128xf32> to vector<2x32xf32>
    %290 = math.tanh %289 : vector<2x32xf32>
    %291 = vector.extract_strided_slice %272 {offsets = [0, 96], sizes = [2, 32], strides = [1, 1]} : vector<2x128xf32> to vector<2x32xf32>
    %292 = arith.negf %291 : vector<2x32xf32>
    %293 = math.exp %292 : vector<2x32xf32>
    %cst_93 = arith.constant 1.000000e+00 : f32
    %294 = vector.broadcast %cst_93 : f32 to vector<2x32xf32>
    %295 = arith.addf %294, %293 : vector<2x32xf32>
    %296 = arith.divf %294, %295 : vector<2x32xf32>
    %297 = arith.mulf %288, %235 : vector<2x32xf32>
    %298 = arith.mulf %282, %290 : vector<2x32xf32>
    %299 = arith.addf %297, %298 : vector<2x32xf32>
    %300 = math.tanh %299 : vector<2x32xf32>
    %301 = arith.mulf %296, %300 : vector<2x32xf32>
    %302 = vector.extract_strided_slice %276 {offsets = [0, 0], sizes = [2, 32], strides = [1, 1]} : vector<2x128xf32> to vector<2x32xf32>
    %303 = arith.negf %302 : vector<2x32xf32>
    %304 = math.exp %303 : vector<2x32xf32>
    %cst_94 = arith.constant 1.000000e+00 : f32
    %305 = vector.broadcast %cst_94 : f32 to vector<2x32xf32>
    %306 = arith.addf %305, %304 : vector<2x32xf32>
    %307 = arith.divf %305, %306 : vector<2x32xf32>
    %308 = vector.extract_strided_slice %276 {offsets = [0, 32], sizes = [2, 32], strides = [1, 1]} : vector<2x128xf32> to vector<2x32xf32>
    %309 = arith.negf %308 : vector<2x32xf32>
    %310 = math.exp %309 : vector<2x32xf32>
    %cst_95 = arith.constant 1.000000e+00 : f32
    %311 = vector.broadcast %cst_95 : f32 to vector<2x32xf32>
    %312 = arith.addf %311, %310 : vector<2x32xf32>
    %313 = arith.divf %311, %312 : vector<2x32xf32>
    %314 = vector.extract_strided_slice %276 {offsets = [0, 64], sizes = [2, 32], strides = [1, 1]} : vector<2x128xf32> to vector<2x32xf32>
    %315 = math.tanh %314 : vector<2x32xf32>
    %316 = vector.extract_strided_slice %276 {offsets = [0, 96], sizes = [2, 32], strides = [1, 1]} : vector<2x128xf32> to vector<2x32xf32>
    %317 = arith.negf %316 : vector<2x32xf32>
    %318 = math.exp %317 : vector<2x32xf32>
    %cst_96 = arith.constant 1.000000e+00 : f32
    %319 = vector.broadcast %cst_96 : f32 to vector<2x32xf32>
    %320 = arith.addf %319, %318 : vector<2x32xf32>
    %321 = arith.divf %319, %320 : vector<2x32xf32>
    %322 = arith.mulf %313, %260 : vector<2x32xf32>
    %323 = arith.mulf %307, %315 : vector<2x32xf32>
    %324 = arith.addf %322, %323 : vector<2x32xf32>
    %325 = math.tanh %324 : vector<2x32xf32>
    %326 = arith.mulf %321, %325 : vector<2x32xf32>
    %c0_97 = arith.constant 0 : index
    %c4_98 = arith.constant 4 : index
    %c0_99 = arith.constant 0 : index
    %327 = vector.load %arg5[%c0_97, %c4_98, %c0_99] : memref<2x8x64xf32, #tpu.memory_space<vmem>>, vector<2x1x32xf32>
    %328 = vector.shape_cast %327 : vector<2x1x32xf32> to vector<2x32xf32>
    %329 = vector.shape_cast %301 : vector<2x32xf32> to vector<2x1x32xf32>
    tpu.vector_store %arg5[%c0_97, %c4_98, %c0_99], %329 {strides = array<i32>} : memref<2x8x64xf32, #tpu.memory_space<vmem>>, vector<2x1x32xf32>,
    %c0_100 = arith.constant 0 : index
    %c3_101 = arith.constant 3 : index
    %c32_102 = arith.constant 32 : index
    %330 = vector.load %arg5[%c0_100, %c3_101, %c32_102] : memref<2x8x64xf32, #tpu.memory_space<vmem>>, vector<2x1x32xf32>
    %331 = vector.shape_cast %330 : vector<2x1x32xf32> to vector<2x32xf32>
    %332 = vector.shape_cast %326 : vector<2x32xf32> to vector<2x1x32xf32>
    tpu.vector_store %arg5[%c0_100, %c3_101, %c32_102], %332 {strides = array<i32>} : memref<2x8x64xf32, #tpu.memory_space<vmem>>, vector<2x1x32xf32>,
    %c0_103 = arith.constant 0 : index
    %c5_104 = arith.constant 5 : index
    %c0_105 = arith.constant 0 : index
    %333 = vector.load %arg7[%c0_103, %c5_104, %c0_105] : memref<2x8x256xf32, #tpu.memory_space<vmem>>, vector<2x1x128xf32>
    %334 = vector.shape_cast %333 : vector<2x1x128xf32> to vector<2x128xf32>
    %cst_106 = arith.constant dense<0.000000e+00> : vector<2x128xf32>
    %335 = tpu.matmul %301, %10, %cst_106 {dimension_numbers = #tpu.dot_dimension_numbers<[1], [0], [0], [1], [0, 0, 1, 1], [], []>} : vector<2x32xf32>, vector<32x128xf32>, vector<2x128xf32> -> vector<2x128xf32>
    %336 = arith.addf %334, %335 : vector<2x128xf32>
    %c0_107 = arith.constant 0 : index
    %c2_108 = arith.constant 2 : index
    %c128_109 = arith.constant 128 : index
    %337 = vector.load %arg7[%c0_107, %c2_108, %c128_109] : memref<2x8x256xf32, #tpu.memory_space<vmem>>, vector<2x1x128xf32>
    %338 = vector.shape_cast %337 : vector<2x1x128xf32> to vector<2x128xf32>
    %cst_110 = arith.constant dense<0.000000e+00> : vector<2x128xf32>
    %339 = tpu.matmul %326, %11, %cst_110 {dimension_numbers = #tpu.dot_dimension_numbers<[1], [0], [0], [1], [0, 0, 1, 1], [], []>} : vector<2x32xf32>, vector<32x128xf32>, vector<2x128xf32> -> vector<2x128xf32>
    %340 = arith.addf %338, %339 : vector<2x128xf32>
    %341 = vector.extract_strided_slice %336 {offsets = [0, 0], sizes = [2, 32], strides = [1, 1]} : vector<2x128xf32> to vector<2x32xf32>
    %342 = arith.negf %341 : vector<2x32xf32>
    %343 = math.exp %342 : vector<2x32xf32>
    %cst_111 = arith.constant 1.000000e+00 : f32
    %344 = vector.broadcast %cst_111 : f32 to vector<2x32xf32>
    %345 = arith.addf %344, %343 : vector<2x32xf32>
    %346 = arith.divf %344, %345 : vector<2x32xf32>
    %347 = vector.extract_strided_slice %336 {offsets = [0, 32], sizes = [2, 32], strides = [1, 1]} : vector<2x128xf32> to vector<2x32xf32>
    %348 = arith.negf %347 : vector<2x32xf32>
    %349 = math.exp %348 : vector<2x32xf32>
    %cst_112 = arith.constant 1.000000e+00 : f32
    %350 = vector.broadcast %cst_112 : f32 to vector<2x32xf32>
    %351 = arith.addf %350, %349 : vector<2x32xf32>
    %352 = arith.divf %350, %351 : vector<2x32xf32>
    %353 = vector.extract_strided_slice %336 {offsets = [0, 64], sizes = [2, 32], strides = [1, 1]} : vector<2x128xf32> to vector<2x32xf32>
    %354 = math.tanh %353 : vector<2x32xf32>
    %355 = vector.extract_strided_slice %336 {offsets = [0, 96], sizes = [2, 32], strides = [1, 1]} : vector<2x128xf32> to vector<2x32xf32>
    %356 = arith.negf %355 : vector<2x32xf32>
    %357 = math.exp %356 : vector<2x32xf32>
    %cst_113 = arith.constant 1.000000e+00 : f32
    %358 = vector.broadcast %cst_113 : f32 to vector<2x32xf32>
    %359 = arith.addf %358, %357 : vector<2x32xf32>
    %360 = arith.divf %358, %359 : vector<2x32xf32>
    %361 = arith.mulf %352, %299 : vector<2x32xf32>
    %362 = arith.mulf %346, %354 : vector<2x32xf32>
    %363 = arith.addf %361, %362 : vector<2x32xf32>
    %364 = math.tanh %363 : vector<2x32xf32>
    %365 = arith.mulf %360, %364 : vector<2x32xf32>
    %366 = vector.extract_strided_slice %340 {offsets = [0, 0], sizes = [2, 32], strides = [1, 1]} : vector<2x128xf32> to vector<2x32xf32>
    %367 = arith.negf %366 : vector<2x32xf32>
    %368 = math.exp %367 : vector<2x32xf32>
    %cst_114 = arith.constant 1.000000e+00 : f32
    %369 = vector.broadcast %cst_114 : f32 to vector<2x32xf32>
    %370 = arith.addf %369, %368 : vector<2x32xf32>
    %371 = arith.divf %369, %370 : vector<2x32xf32>
    %372 = vector.extract_strided_slice %340 {offsets = [0, 32], sizes = [2, 32], strides = [1, 1]} : vector<2x128xf32> to vector<2x32xf32>
    %373 = arith.negf %372 : vector<2x32xf32>
    %374 = math.exp %373 : vector<2x32xf32>
    %cst_115 = arith.constant 1.000000e+00 : f32
    %375 = vector.broadcast %cst_115 : f32 to vector<2x32xf32>
    %376 = arith.addf %375, %374 : vector<2x32xf32>
    %377 = arith.divf %375, %376 : vector<2x32xf32>
    %378 = vector.extract_strided_slice %340 {offsets = [0, 64], sizes = [2, 32], strides = [1, 1]} : vector<2x128xf32> to vector<2x32xf32>
    %379 = math.tanh %378 : vector<2x32xf32>
    %380 = vector.extract_strided_slice %340 {offsets = [0, 96], sizes = [2, 32], strides = [1, 1]} : vector<2x128xf32> to vector<2x32xf32>
    %381 = arith.negf %380 : vector<2x32xf32>
    %382 = math.exp %381 : vector<2x32xf32>
    %cst_116 = arith.constant 1.000000e+00 : f32
    %383 = vector.broadcast %cst_116 : f32 to vector<2x32xf32>
    %384 = arith.addf %383, %382 : vector<2x32xf32>
    %385 = arith.divf %383, %384 : vector<2x32xf32>
    %386 = arith.mulf %377, %324 : vector<2x32xf32>
    %387 = arith.mulf %371, %379 : vector<2x32xf32>
    %388 = arith.addf %386, %387 : vector<2x32xf32>
    %389 = math.tanh %388 : vector<2x32xf32>
    %390 = arith.mulf %385, %389 : vector<2x32xf32>
    %c0_117 = arith.constant 0 : index
    %c5_118 = arith.constant 5 : index
    %c0_119 = arith.constant 0 : index
    %391 = vector.load %arg5[%c0_117, %c5_118, %c0_119] : memref<2x8x64xf32, #tpu.memory_space<vmem>>, vector<2x1x32xf32>
    %392 = vector.shape_cast %391 : vector<2x1x32xf32> to vector<2x32xf32>
    %393 = vector.shape_cast %365 : vector<2x32xf32> to vector<2x1x32xf32>
    tpu.vector_store %arg5[%c0_117, %c5_118, %c0_119], %393 {strides = array<i32>} : memref<2x8x64xf32, #tpu.memory_space<vmem>>, vector<2x1x32xf32>,
    %c0_120 = arith.constant 0 : index
    %c2_121 = arith.constant 2 : index
    %c32_122 = arith.constant 32 : index
    %394 = vector.load %arg5[%c0_120, %c2_121, %c32_122] : memref<2x8x64xf32, #tpu.memory_space<vmem>>, vector<2x1x32xf32>
    %395 = vector.shape_cast %394 : vector<2x1x32xf32> to vector<2x32xf32>
    %396 = vector.shape_cast %390 : vector<2x32xf32> to vector<2x1x32xf32>
    tpu.vector_store %arg5[%c0_120, %c2_121, %c32_122], %396 {strides = array<i32>} : memref<2x8x64xf32, #tpu.memory_space<vmem>>, vector<2x1x32xf32>,
    %c0_123 = arith.constant 0 : index
    %c6_124 = arith.constant 6 : index
    %c0_125 = arith.constant 0 : index
    %397 = vector.load %arg7[%c0_123, %c6_124, %c0_125] : memref<2x8x256xf32, #tpu.memory_space<vmem>>, vector<2x1x128xf32>
    %398 = vector.shape_cast %397 : vector<2x1x128xf32> to vector<2x128xf32>
    %cst_126 = arith.constant dense<0.000000e+00> : vector<2x128xf32>
    %399 = tpu.matmul %365, %10, %cst_126 {dimension_numbers = #tpu.dot_dimension_numbers<[1], [0], [0], [1], [0, 0, 1, 1], [], []>} : vector<2x32xf32>, vector<32x128xf32>, vector<2x128xf32> -> vector<2x128xf32>
    %400 = arith.addf %398, %399 : vector<2x128xf32>
    %c0_127 = arith.constant 0 : index
    %c1_128 = arith.constant 1 : index
    %c128_129 = arith.constant 128 : index
    %401 = vector.load %arg7[%c0_127, %c1_128, %c128_129] : memref<2x8x256xf32, #tpu.memory_space<vmem>>, vector<2x1x128xf32>
    %402 = vector.shape_cast %401 : vector<2x1x128xf32> to vector<2x128xf32>
    %cst_130 = arith.constant dense<0.000000e+00> : vector<2x128xf32>
    %403 = tpu.matmul %390, %11, %cst_130 {dimension_numbers = #tpu.dot_dimension_numbers<[1], [0], [0], [1], [0, 0, 1, 1], [], []>} : vector<2x32xf32>, vector<32x128xf32>, vector<2x128xf32> -> vector<2x128xf32>
    %404 = arith.addf %402, %403 : vector<2x128xf32>
    %405 = vector.extract_strided_slice %400 {offsets = [0, 0], sizes = [2, 32], strides = [1, 1]} : vector<2x128xf32> to vector<2x32xf32>
    %406 = arith.negf %405 : vector<2x32xf32>
    %407 = math.exp %406 : vector<2x32xf32>
    %cst_131 = arith.constant 1.000000e+00 : f32
    %408 = vector.broadcast %cst_131 : f32 to vector<2x32xf32>
    %409 = arith.addf %408, %407 : vector<2x32xf32>
    %410 = arith.divf %408, %409 : vector<2x32xf32>
    %411 = vector.extract_strided_slice %400 {offsets = [0, 32], sizes = [2, 32], strides = [1, 1]} : vector<2x128xf32> to vector<2x32xf32>
    %412 = arith.negf %411 : vector<2x32xf32>
    %413 = math.exp %412 : vector<2x32xf32>
    %cst_132 = arith.constant 1.000000e+00 : f32
    %414 = vector.broadcast %cst_132 : f32 to vector<2x32xf32>
    %415 = arith.addf %414, %413 : vector<2x32xf32>
    %416 = arith.divf %414, %415 : vector<2x32xf32>
    %417 = vector.extract_strided_slice %400 {offsets = [0, 64], sizes = [2, 32], strides = [1, 1]} : vector<2x128xf32> to vector<2x32xf32>
    %418 = math.tanh %417 : vector<2x32xf32>
    %419 = vector.extract_strided_slice %400 {offsets = [0, 96], sizes = [2, 32], strides = [1, 1]} : vector<2x128xf32> to vector<2x32xf32>
    %420 = arith.negf %419 : vector<2x32xf32>
    %421 = math.exp %420 : vector<2x32xf32>
    %cst_133 = arith.constant 1.000000e+00 : f32
    %422 = vector.broadcast %cst_133 : f32 to vector<2x32xf32>
    %423 = arith.addf %422, %421 : vector<2x32xf32>
    %424 = arith.divf %422, %423 : vector<2x32xf32>
    %425 = arith.mulf %416, %363 : vector<2x32xf32>
    %426 = arith.mulf %410, %418 : vector<2x32xf32>
    %427 = arith.addf %425, %426 : vector<2x32xf32>
    %428 = math.tanh %427 : vector<2x32xf32>
    %429 = arith.mulf %424, %428 : vector<2x32xf32>
    %430 = vector.extract_strided_slice %404 {offsets = [0, 0], sizes = [2, 32], strides = [1, 1]} : vector<2x128xf32> to vector<2x32xf32>
    %431 = arith.negf %430 : vector<2x32xf32>
    %432 = math.exp %431 : vector<2x32xf32>
    %cst_134 = arith.constant 1.000000e+00 : f32
    %433 = vector.broadcast %cst_134 : f32 to vector<2x32xf32>
    %434 = arith.addf %433, %432 : vector<2x32xf32>
    %435 = arith.divf %433, %434 : vector<2x32xf32>
    %436 = vector.extract_strided_slice %404 {offsets = [0, 32], sizes = [2, 32], strides = [1, 1]} : vector<2x128xf32> to vector<2x32xf32>
    %437 = arith.negf %436 : vector<2x32xf32>
    %438 = math.exp %437 : vector<2x32xf32>
    %cst_135 = arith.constant 1.000000e+00 : f32
    %439 = vector.broadcast %cst_135 : f32 to vector<2x32xf32>
    %440 = arith.addf %439, %438 : vector<2x32xf32>
    %441 = arith.divf %439, %440 : vector<2x32xf32>
    %442 = vector.extract_strided_slice %404 {offsets = [0, 64], sizes = [2, 32], strides = [1, 1]} : vector<2x128xf32> to vector<2x32xf32>
    %443 = math.tanh %442 : vector<2x32xf32>
    %444 = vector.extract_strided_slice %404 {offsets = [0, 96], sizes = [2, 32], strides = [1, 1]} : vector<2x128xf32> to vector<2x32xf32>
    %445 = arith.negf %444 : vector<2x32xf32>
    %446 = math.exp %445 : vector<2x32xf32>
    %cst_136 = arith.constant 1.000000e+00 : f32
    %447 = vector.broadcast %cst_136 : f32 to vector<2x32xf32>
    %448 = arith.addf %447, %446 : vector<2x32xf32>
    %449 = arith.divf %447, %448 : vector<2x32xf32>
    %450 = arith.mulf %441, %388 : vector<2x32xf32>
    %451 = arith.mulf %435, %443 : vector<2x32xf32>
    %452 = arith.addf %450, %451 : vector<2x32xf32>
    %453 = math.tanh %452 : vector<2x32xf32>
    %454 = arith.mulf %449, %453 : vector<2x32xf32>
    %c0_137 = arith.constant 0 : index
    %c6_138 = arith.constant 6 : index
    %c0_139 = arith.constant 0 : index
    %455 = vector.load %arg5[%c0_137, %c6_138, %c0_139] : memref<2x8x64xf32, #tpu.memory_space<vmem>>, vector<2x1x32xf32>
    %456 = vector.shape_cast %455 : vector<2x1x32xf32> to vector<2x32xf32>
    %457 = vector.shape_cast %429 : vector<2x32xf32> to vector<2x1x32xf32>
    tpu.vector_store %arg5[%c0_137, %c6_138, %c0_139], %457 {strides = array<i32>} : memref<2x8x64xf32, #tpu.memory_space<vmem>>, vector<2x1x32xf32>,
    %c0_140 = arith.constant 0 : index
    %c1_141 = arith.constant 1 : index
    %c32_142 = arith.constant 32 : index
    %458 = vector.load %arg5[%c0_140, %c1_141, %c32_142] : memref<2x8x64xf32, #tpu.memory_space<vmem>>, vector<2x1x32xf32>
    %459 = vector.shape_cast %458 : vector<2x1x32xf32> to vector<2x32xf32>
    %460 = vector.shape_cast %454 : vector<2x32xf32> to vector<2x1x32xf32>
    tpu.vector_store %arg5[%c0_140, %c1_141, %c32_142], %460 {strides = array<i32>} : memref<2x8x64xf32, #tpu.memory_space<vmem>>, vector<2x1x32xf32>,
    %c0_143 = arith.constant 0 : index
    %c7_144 = arith.constant 7 : index
    %c0_145 = arith.constant 0 : index
    %461 = vector.load %arg7[%c0_143, %c7_144, %c0_145] : memref<2x8x256xf32, #tpu.memory_space<vmem>>, vector<2x1x128xf32>
    %462 = vector.shape_cast %461 : vector<2x1x128xf32> to vector<2x128xf32>
    %cst_146 = arith.constant dense<0.000000e+00> : vector<2x128xf32>
    %463 = tpu.matmul %429, %10, %cst_146 {dimension_numbers = #tpu.dot_dimension_numbers<[1], [0], [0], [1], [0, 0, 1, 1], [], []>} : vector<2x32xf32>, vector<32x128xf32>, vector<2x128xf32> -> vector<2x128xf32>
    %464 = arith.addf %462, %463 : vector<2x128xf32>
    %c0_147 = arith.constant 0 : index
    %c0_148 = arith.constant 0 : index
    %c128_149 = arith.constant 128 : index
    %465 = vector.load %arg7[%c0_147, %c0_148, %c128_149] : memref<2x8x256xf32, #tpu.memory_space<vmem>>, vector<2x1x128xf32>
    %466 = vector.shape_cast %465 : vector<2x1x128xf32> to vector<2x128xf32>
    %cst_150 = arith.constant dense<0.000000e+00> : vector<2x128xf32>
    %467 = tpu.matmul %454, %11, %cst_150 {dimension_numbers = #tpu.dot_dimension_numbers<[1], [0], [0], [1], [0, 0, 1, 1], [], []>} : vector<2x32xf32>, vector<32x128xf32>, vector<2x128xf32> -> vector<2x128xf32>
    %468 = arith.addf %466, %467 : vector<2x128xf32>
    %469 = vector.extract_strided_slice %464 {offsets = [0, 0], sizes = [2, 32], strides = [1, 1]} : vector<2x128xf32> to vector<2x32xf32>
    %470 = arith.negf %469 : vector<2x32xf32>
    %471 = math.exp %470 : vector<2x32xf32>
    %cst_151 = arith.constant 1.000000e+00 : f32
    %472 = vector.broadcast %cst_151 : f32 to vector<2x32xf32>
    %473 = arith.addf %472, %471 : vector<2x32xf32>
    %474 = arith.divf %472, %473 : vector<2x32xf32>
    %475 = vector.extract_strided_slice %464 {offsets = [0, 32], sizes = [2, 32], strides = [1, 1]} : vector<2x128xf32> to vector<2x32xf32>
    %476 = arith.negf %475 : vector<2x32xf32>
    %477 = math.exp %476 : vector<2x32xf32>
    %cst_152 = arith.constant 1.000000e+00 : f32
    %478 = vector.broadcast %cst_152 : f32 to vector<2x32xf32>
    %479 = arith.addf %478, %477 : vector<2x32xf32>
    %480 = arith.divf %478, %479 : vector<2x32xf32>
    %481 = vector.extract_strided_slice %464 {offsets = [0, 64], sizes = [2, 32], strides = [1, 1]} : vector<2x128xf32> to vector<2x32xf32>
    %482 = math.tanh %481 : vector<2x32xf32>
    %483 = vector.extract_strided_slice %464 {offsets = [0, 96], sizes = [2, 32], strides = [1, 1]} : vector<2x128xf32> to vector<2x32xf32>
    %484 = arith.negf %483 : vector<2x32xf32>
    %485 = math.exp %484 : vector<2x32xf32>
    %cst_153 = arith.constant 1.000000e+00 : f32
    %486 = vector.broadcast %cst_153 : f32 to vector<2x32xf32>
    %487 = arith.addf %486, %485 : vector<2x32xf32>
    %488 = arith.divf %486, %487 : vector<2x32xf32>
    %489 = arith.mulf %480, %427 : vector<2x32xf32>
    %490 = arith.mulf %474, %482 : vector<2x32xf32>
    %491 = arith.addf %489, %490 : vector<2x32xf32>
    %492 = math.tanh %491 : vector<2x32xf32>
    %493 = arith.mulf %488, %492 : vector<2x32xf32>
    %494 = vector.extract_strided_slice %468 {offsets = [0, 0], sizes = [2, 32], strides = [1, 1]} : vector<2x128xf32> to vector<2x32xf32>
    %495 = arith.negf %494 : vector<2x32xf32>
    %496 = math.exp %495 : vector<2x32xf32>
    %cst_154 = arith.constant 1.000000e+00 : f32
    %497 = vector.broadcast %cst_154 : f32 to vector<2x32xf32>
    %498 = arith.addf %497, %496 : vector<2x32xf32>
    %499 = arith.divf %497, %498 : vector<2x32xf32>
    %500 = vector.extract_strided_slice %468 {offsets = [0, 32], sizes = [2, 32], strides = [1, 1]} : vector<2x128xf32> to vector<2x32xf32>
    %501 = arith.negf %500 : vector<2x32xf32>
    %502 = math.exp %501 : vector<2x32xf32>
    %cst_155 = arith.constant 1.000000e+00 : f32
    %503 = vector.broadcast %cst_155 : f32 to vector<2x32xf32>
    %504 = arith.addf %503, %502 : vector<2x32xf32>
    %505 = arith.divf %503, %504 : vector<2x32xf32>
    %506 = vector.extract_strided_slice %468 {offsets = [0, 64], sizes = [2, 32], strides = [1, 1]} : vector<2x128xf32> to vector<2x32xf32>
    %507 = math.tanh %506 : vector<2x32xf32>
    %508 = vector.extract_strided_slice %468 {offsets = [0, 96], sizes = [2, 32], strides = [1, 1]} : vector<2x128xf32> to vector<2x32xf32>
    %509 = arith.negf %508 : vector<2x32xf32>
    %510 = math.exp %509 : vector<2x32xf32>
    %cst_156 = arith.constant 1.000000e+00 : f32
    %511 = vector.broadcast %cst_156 : f32 to vector<2x32xf32>
    %512 = arith.addf %511, %510 : vector<2x32xf32>
    %513 = arith.divf %511, %512 : vector<2x32xf32>
    %514 = arith.mulf %505, %452 : vector<2x32xf32>
    %515 = arith.mulf %499, %507 : vector<2x32xf32>
    %516 = arith.addf %514, %515 : vector<2x32xf32>
    %517 = math.tanh %516 : vector<2x32xf32>
    %518 = arith.mulf %513, %517 : vector<2x32xf32>
    %c0_157 = arith.constant 0 : index
    %c7_158 = arith.constant 7 : index
    %c0_159 = arith.constant 0 : index
    %519 = vector.load %arg5[%c0_157, %c7_158, %c0_159] : memref<2x8x64xf32, #tpu.memory_space<vmem>>, vector<2x1x32xf32>
    %520 = vector.shape_cast %519 : vector<2x1x32xf32> to vector<2x32xf32>
    %521 = vector.shape_cast %493 : vector<2x32xf32> to vector<2x1x32xf32>
    tpu.vector_store %arg5[%c0_157, %c7_158, %c0_159], %521 {strides = array<i32>} : memref<2x8x64xf32, #tpu.memory_space<vmem>>, vector<2x1x32xf32>,
    %c0_160 = arith.constant 0 : index
    %c0_161 = arith.constant 0 : index
    %c32_162 = arith.constant 32 : index
    %522 = vector.load %arg5[%c0_160, %c0_161, %c32_162] : memref<2x8x64xf32, #tpu.memory_space<vmem>>, vector<2x1x32xf32>
    %523 = vector.shape_cast %522 : vector<2x1x32xf32> to vector<2x32xf32>
    %524 = vector.shape_cast %518 : vector<2x32xf32> to vector<2x1x32xf32>
    tpu.vector_store %arg5[%c0_160, %c0_161, %c32_162], %524 {strides = array<i32>} : memref<2x8x64xf32, #tpu.memory_space<vmem>>, vector<2x1x32xf32>,
    %c0_163 = arith.constant 0 : index
    %c0_164 = arith.constant 0 : index
    %c0_165 = arith.constant 0 : index
    %525 = vector.load %arg6[%c0_163, %c0_164, %c0_165] : memref<2x2x32xf32, #tpu.memory_space<vmem>>, vector<2x1x32xf32>
    %526 = vector.shape_cast %525 : vector<2x1x32xf32> to vector<2x32xf32>
    %527 = vector.shape_cast %493 : vector<2x32xf32> to vector<2x1x32xf32>
    tpu.vector_store %arg6[%c0_163, %c0_164, %c0_165], %527 {strides = array<i32>} : memref<2x2x32xf32, #tpu.memory_space<vmem>>, vector<2x1x32xf32>,
    %c0_166 = arith.constant 0 : index
    %c1_167 = arith.constant 1 : index
    %c0_168 = arith.constant 0 : index
    %528 = vector.load %arg6[%c0_166, %c1_167, %c0_168] : memref<2x2x32xf32, #tpu.memory_space<vmem>>, vector<2x1x32xf32>
    %529 = vector.shape_cast %528 : vector<2x1x32xf32> to vector<2x32xf32>
    %530 = vector.shape_cast %518 : vector<2x32xf32> to vector<2x1x32xf32>
    tpu.vector_store %arg6[%c0_166, %c1_167, %c0_168], %530 {strides = array<i32>} : memref<2x2x32xf32, #tpu.memory_space<vmem>>, vector<2x1x32xf32>,
    return
  }
  func.func @transform_0(%arg0: i32) -> (i32, i32, i32) {
    %c0_i32 = arith.constant 0 : i32
    %c0_i32_0 = arith.constant 0 : i32
    %c0_i32_1 = arith.constant 0 : i32
    return %arg0, %c0_i32, %c0_i32_0 : i32, i32, i32
  }
  func.func @transform_1(%arg0: i32) -> (i32, i32) {
    %c0_i32 = arith.constant 0 : i32
    %c0_i32_0 = arith.constant 0 : i32
    %c0_i32_1 = arith.constant 0 : i32
    return %c0_i32, %c0_i32_0 : i32, i32
  }
  func.func @transform_2(%arg0: i32) -> (i32, i32) {
    %c0_i32 = arith.constant 0 : i32
    %c0_i32_0 = arith.constant 0 : i32
    %c0_i32_1 = arith.constant 0 : i32
    return %c0_i32, %c0_i32_0 : i32, i32
  }
  func.func @transform_3(%arg0: i32) -> (i32, i32) {
    %c0_i32 = arith.constant 0 : i32
    %c0_i32_0 = arith.constant 0 : i32
    %c0_i32_1 = arith.constant 0 : i32
    return %c0_i32, %c0_i32_0 : i32, i32
  }
  func.func @transform_4(%arg0: i32) -> (i32, i32, i32) {
    %c0_i32 = arith.constant 0 : i32
    %c0_i32_0 = arith.constant 0 : i32
    %c0_i32_1 = arith.constant 0 : i32
    return %arg0, %c0_i32, %c0_i32_0 : i32, i32, i32
  }
  func.func @transform_5(%arg0: i32) -> (i32, i32, i32) {
    %c0_i32 = arith.constant 0 : i32
    %c0_i32_0 = arith.constant 0 : i32
    %c0_i32_1 = arith.constant 0 : i32
    return %arg0, %c0_i32, %c0_i32_0 : i32, i32, i32
  }
}

</mosaic_0001>

<llo_original>
// kernel: tpu_custom_call.1
$region0: #{tpu_custom_call.1}
  #allocation0 [shape = 'u32[]', space=smem, size = 0x4, offset = 0x4, fixed_abs, tag = 'smem constant byte address 0x4 - core index']
  #allocation1 [shape = 'u32[72,128]{1,0:T(1,128)}', space=vmem, size = 0x9000, scoped, tag = 'internal scratch']
  #allocation2 [shape = 'f32[2,8,256]{2,1,0:T(8,128)}', space=vmem, size = 0x4000, scoped, tag = 'scratch operand']
  %s0 = inlined_call_operand.hbm [shape: f32[2,8,16], index: 0, kind: input, shape index: {}]
  %s1 = inlined_call_operand.hbm [shape: f32[16,256], index: 1, kind: input, shape index: {}]
  %s2 = inlined_call_operand.hbm [shape: f32[32,256], index: 2, kind: input, shape index: {}]
  %s3 = inlined_call_operand.vmem [shape: f32[1,256], index: 3, kind: input, shape index: {}]
  %s4 = inlined_call_operand.hbm [shape: f32[2,8,64], index: 4, kind: output, shape index: {0}]
  %s5 = inlined_call_operand.hbm [shape: f32[2,2,32], index: 5, kind: output, shape index: {1}]
  %6 = xla_tuple %s4, %s5
  %s7 = sld [smem:[#allocation0]]
  $region46: #{tpu_custom_call.1} parent=0
    _
  %s9 = ssub.s32 1, %s7
  %s10 = scalar_select 0, %s9, %s7
  $region1: #{tpu_custom_call.1} parent=0
    #allocation3 [shape = 'u8[8192]{0}', space=vmem, size = 0x2000, scoped, tag = 'input window, operand 0, single buffered']
    #allocation4 [shape = 's32[1]{0}', space=sflag, size = 0x4, scoped, tag = 'scoped memory for tpu_custom_call.1']
    #allocation5 [shape = 's32[1]{0}', space=sflag, size = 0x4, scoped, tag = 'scoped memory for tpu_custom_call.1']
    #allocation6 [shape = 'u8[16384]{0}', space=vmem, size = 0x4000, scoped, tag = 'input window, operand 1, single buffered']
    #allocation7 [shape = 's32[1]{0}', space=sflag, size = 0x4, scoped, tag = 'scoped memory for tpu_custom_call.1']
    #allocation8 [shape = 'u8[32768]{0}', space=vmem, size = 0x8000, scoped, tag = 'input window, operand 2, single buffered']
    #allocation9 [shape = 'u8[8192]{0}', space=vmem, size = 0x2000, scoped, tag = 'output window, operand 0, single buffered']
    #allocation10 [shape = 'u8[2048]{0}', space=vmem, size = 0x800, scoped, tag = 'output window, operand 1, single buffered']
    #allocation11 [shape = 's32[1]{0}', space=sflag, size = 0x4, scoped, tag = 'scoped memory for tpu_custom_call.1']
    %11 = vsyncpa [#allocation4], 0
    %12 = vsyncpa [#allocation7], 0
    %13 = vsyncpa [#allocation5], 0
    %14 = vsyncpa [#allocation11], 0
    // Predicated region
    $region2: #{tpu_custom_call.1} parent=1 // pred_check
      _
    $region3: #{tpu_custom_call.1} parent=1 // pred_check_branch
      %16 = sbr.rel (0) target = $region5
    $region4: #{tpu_custom_call.1} parent=1 // pred_region
      %18 = vsyncadd [#allocation4], 0
      %s19 = sshll.u32 %s0, 4
      %s20 = int_to_ptr.hbm [resolvable:$true] %s19
      %s21 = sshll.u32 [#allocation3], 4
      %s22 = int_to_ptr.vmem [resolvable:$true] %s21
      %27 = dma.hbm_to_vmem [thread:$0]  %s20, 256, %s22, [#allocation4], 128, 128, 8
    $region5: #{tpu_custom_call.1} parent=1 // pred_fallthru
      _
    // Predicated region
    $region6: #{tpu_custom_call.1} parent=1 // pred_check
      _
    $region7: #{tpu_custom_call.1} parent=1 // pred_check_branch
      %29 = sbr.rel (0) target = $region9
    $region8: #{tpu_custom_call.1} parent=1 // pred_region
      %31 = vsyncadd [#allocation7], 0
      %s32 = sshll.u32 %s1, 4
      %s33 = int_to_ptr.hbm [resolvable:$true] %s32
      %s34 = sshll.u32 [#allocation6], 4
      %s35 = int_to_ptr.vmem [resolvable:$true] %s34
      %40 = dma.hbm_to_vmem [thread:$0]  %s33, 512, %s35, [#allocation7], 256, 256, 16
    $region9: #{tpu_custom_call.1} parent=1 // pred_fallthru
      _
    // Predicated region
    $region10: #{tpu_custom_call.1} parent=1 // pred_check
      _
    $region11: #{tpu_custom_call.1} parent=1 // pred_check_branch
      %42 = sbr.rel (0) target = $region13
    $region12: #{tpu_custom_call.1} parent=1 // pred_region
      %44 = vsyncadd [#allocation7], 0
      %s45 = sshll.u32 %s2, 4
      %s46 = int_to_ptr.hbm [resolvable:$true] %s45
      %s47 = sshll.u32 [#allocation8], 4
      %s48 = int_to_ptr.vmem [resolvable:$true] %s47
      %53 = dma.hbm_to_vmem [thread:$0]  %s46, 1024, %s48, [#allocation7], 256, 256, 16
    $region13: #{tpu_custom_call.1} parent=1 // pred_fallthru
      _
    // Predicated region
    $region14: #{tpu_custom_call.1} parent=1 // pred_check
      _
    $region15: #{tpu_custom_call.1} parent=1 // pred_check_branch
      %55 = sbr.rel (0) target = $region17
    $region16: #{tpu_custom_call.1} parent=1 // pred_region
      _
    $region17: #{tpu_custom_call.1} parent=1 // pred_fallthru
      _
    // Predicated region
    $region18: #{tpu_custom_call.1} parent=1 // pred_check
      _
    $region19: #{tpu_custom_call.1} parent=1 // pred_check_branch
      %57 = sbr.rel (0) target = $region21
    $region20: #{tpu_custom_call.1} parent=1 // pred_region
      %59 = dma.done [#allocation4], 256
    $region21: #{tpu_custom_call.1} parent=1 // pred_fallthru
      _
    // Predicated region
    $region22: #{tpu_custom_call.1} parent=1 // pred_check
      _
    $region23: #{tpu_custom_call.1} parent=1 // pred_check_branch
      %61 = sbr.rel (0) target = $region25
    $region24: #{tpu_custom_call.1} parent=1 // pred_region
      %63 = dma.done [#allocation7], 512
    $region25: #{tpu_custom_call.1} parent=1 // pred_fallthru
      _
    // Predicated region
    $region26: #{tpu_custom_call.1} parent=1 // pred_check
      _
    $region27: #{tpu_custom_call.1} parent=1 // pred_check_branch
      %65 = sbr.rel (0) target = $region29
    $region28: #{tpu_custom_call.1} parent=1 // pred_region
      %67 = dma.done [#allocation7], 1024
    $region29: #{tpu_custom_call.1} parent=1 // pred_fallthru
      _
    %v68 = vld [vmem:[#allocation3] sm:$0xff]
    %v69 = vld [vmem:[#allocation3 + $0x8] sm:$0xff]
    %v70 = vld [vmem:[#allocation6] sm:$0xff]
    %v71 = vld [vmem:[#allocation6 + $0x8] sm:$0xff]
    %v72 = vld [vmem:[#allocation6 + $0x10] sm:$0xff]
    %v73 = vld [vmem:[#allocation6 + $0x18] sm:$0xff]
    %v74 = vld [vmem:[%s3] sm:$0x3]
    %v76 = vperm.slane %v74, 0
    %v77 = vperm.slane %v74, 1
    %vm80 = vcmask 130048
    %v82 = vsel %vm80, %v68, 0
    %v85 = vsel %vm80, %v69, 0
    %87 = vmatpush.msra.mxu0 0.0
    %88 = vmatpush.msra.mxu0 0.0
    %89 = vmatpush.msra.mxu0 0.0
    %90 = vmatpush.msra.mxu0 0.0
    %91 = vmatpush.msra.mxu0 0.0
    %92 = vmatpush.msra.mxu0 0.0
    %93 = vmatpush.msra.mxu0 0.0
    %94 = vmatpush.msra.mxu0 0.0
    %95 = vmatpush.msra.mxu0 0.0
    %96 = vmatpush.msra.mxu0 0.0
    %97 = vmatpush.msra.mxu0 0.0
    %98 = vmatpush.msra.mxu0 0.0
    %99 = vmatpush.msra.mxu0 0.0
    %100 = vmatpush.msra.mxu0 0.0
    %101 = vmatpush.msra.mxu0 %v72
    %102 = vmatpush.msra.mxu0 %v70
    %103 = vmatmul.f32.gmra.mxu0 %v82
    %v104 = vpop.f32.mrf.mxu0
    %v105 = vadd.f32 %v76, %v104
    %106 = vmatmul.f32.gmra.mxu0 %v85
    %v107 = vpop.f32.mrf.mxu0
    %v108 = vadd.f32 %v76, %v107
    %109 = vdwg.mxu0
    %110 = vmatpush.msra.mxu0 0.0
    %111 = vmatpush.msra.mxu0 0.0
    %112 = vmatpush.msra.mxu0 0.0
    %113 = vmatpush.msra.mxu0 0.0
    %114 = vmatpush.msra.mxu0 0.0
    %115 = vmatpush.msra.mxu0 0.0
    %116 = vmatpush.msra.mxu0 0.0
    %117 = vmatpush.msra.mxu0 0.0
    %118 = vmatpush.msra.mxu0 0.0
    %119 = vmatpush.msra.mxu0 0.0
    %120 = vmatpush.msra.mxu0 0.0
    %121 = vmatpush.msra.mxu0 0.0
    %122 = vmatpush.msra.mxu0 0.0
    %123 = vmatpush.msra.mxu0 0.0
    %124 = vmatpush.msra.mxu0 %v73
    %125 = vmatpush.msra.mxu0 %v71
    %126 = vmatmul.f32.gmra.mxu0 %v82
    %v127 = vpop.f32.mrf.mxu0
    %v128 = vadd.f32 %v77, %v127
    %129 = vmatmul.f32.gmra.mxu0 %v85
    %v130 = vpop.f32.mrf.mxu0
    %v131 = vadd.f32 %v77, %v130
    %132 = vdwg.mxu0
    %133 = vst [vmem:[#allocation2] sm:$0xff] %v105
    %134 = vst [vmem:[#allocation2 + $0x8] sm:$0xff] %v128
    %135 = vst [vmem:[#allocation2 + $0x10] sm:$0xff] %v108
    %136 = vst [vmem:[#allocation2 + $0x18] sm:$0xff] %v131
    %v137 = vld [vmem:[#allocation8] sm:$0xff]
    %v138 = vld [vmem:[#allocation8 + $0x8] sm:$0xff]
    %v139 = vld [vmem:[#allocation8 + $0x10] sm:$0xff]
    %v140 = vld [vmem:[#allocation8 + $0x18] sm:$0xff]
    %v141 = vld [vmem:[#allocation8 + $0x20] sm:$0xff]
    %v142 = vld [vmem:[#allocation8 + $0x28] sm:$0xff]
    %v143 = vld [vmem:[#allocation8 + $0x30] sm:$0xff]
    %v144 = vld [vmem:[#allocation8 + $0x38] sm:$0xff]
    %v145 = vld [vmem:[#allocation2] ss:$0 sm:$0xff]
    %v146 = vld [vmem:[#allocation2 + $0x10] ss:$0 sm:$0xff]
    %vm147 = vcmask 261120
    %v149 = vsel %vm147, 0.0, 0
    %151 = vmatpush.msra.mxu0 0.0
    %152 = vmatpush.msra.mxu0 0.0
    %153 = vmatpush.msra.mxu0 0.0
    %154 = vmatpush.msra.mxu0 0.0
    %155 = vmatpush.msra.mxu0 0.0
    %156 = vmatpush.msra.mxu0 0.0
    %157 = vmatpush.msra.mxu0 0.0
    %158 = vmatpush.msra.mxu0 0.0
    %159 = vmatpush.msra.mxu0 0.0
    %160 = vmatpush.msra.mxu0 0.0
    %161 = vmatpush.msra.mxu0 0.0
    %162 = vmatpush.msra.mxu0 0.0
    %163 = vmatpush.msra.mxu0 %v143
    %164 = vmatpush.msra.mxu0 %v141
    %165 = vmatpush.msra.mxu0 %v139
    %166 = vmatpush.msra.mxu0 %v137
    %167 = vmatmul.f32.gmra.mxu0 %v149
    %v168 = vpop.f32.mrf.mxu0
    %v169 = vadd.f32 0.0, %v168
    %170 = vdwg.mxu0
    %v172 = vrot.slane %v169, 1
    %v175 = vadd.f32 %v145, %v169
    %v176 = vadd.f32 %v146, %v172
    %v177 = vld [vmem:[#allocation2 + $0xf] ss:$0 sm:$0xff]
    %v178 = vld [vmem:[#allocation2 + $0x1f] ss:$0 sm:$0xff]
    %179 = vmatpush.msra.mxu0 0.0
    %180 = vmatpush.msra.mxu0 0.0
    %181 = vmatpush.msra.mxu0 0.0
    %182 = vmatpush.msra.mxu0 0.0
    %183 = vmatpush.msra.mxu0 0.0
    %184 = vmatpush.msra.mxu0 0.0
    %185 = vmatpush.msra.mxu0 0.0
    %186 = vmatpush.msra.mxu0 0.0
    %187 = vmatpush.msra.mxu0 0.0
    %188 = vmatpush.msra.mxu0 0.0
    %189 = vmatpush.msra.mxu0 0.0
    %190 = vmatpush.msra.mxu0 0.0
    %191 = vmatpush.msra.mxu0 %v144
    %192 = vmatpush.msra.mxu0 %v142
    %193 = vmatpush.msra.mxu0 %v140
    %194 = vmatpush.msra.mxu0 %v138
    %195 = vmatmul.f32.gmra.mxu0 %v149
    %v196 = vpop.f32.mrf.mxu0
    %v197 = vadd.f32 0.0, %v196
    %198 = vdwg.mxu0
    %v200 = vrot.slane %v197, 1
    %v203 = vadd.f32 %v177, %v197
    %v204 = vadd.f32 %v178, %v200
    %v205 = vxor.u32 %v175, 2147483648
    %v206 = vxor.u32 %v176, 2147483648
    %v207 = vmul.f32 %v205, 1.442695
    %v208 = vpow.pop %v207
    %v209 = vmul.f32 %v206, 1.442695
    %v210 = vpow.pop %v209
    %v211 = vadd.f32 %v208, 1.0
    %v212 = vadd.f32 %v210, 1.0
    %v213 = vrcp.pop %v211
    %v214 = vmul.f32 %v211, %v213
    %v215 = vsub.f32 1.0, %v214
    %v216 = vmul.f32 %v213, %v215
    %v217 = vadd.f32 %v213, %v216
    %vm218 = vweird.f32 %v211
    %vm219 = vweird.f32 %v213
    %vm220 = vmor %vm218, %vm219
    %v221 = vsel %vm220, %v213, %v217
    %v222 = vand.u32 2147483647, %v211
    %vm223 = vcmp.eq.f32.partialorder %v222, 8.507059e+37
    %v224 = vand.u32 %v211, 2147483648
    %v225 = vor.u32 1.1754944e-38, %v224
    %v226 = vsel %vm223, %v225, %v221
    %v227 = vmul.f32 1.0, %v226
    %v228 = vrcp.pop %v212
    %v229 = vmul.f32 %v212, %v228
    %v230 = vsub.f32 1.0, %v229
    %v231 = vmul.f32 %v228, %v230
    %v232 = vadd.f32 %v228, %v231
    %vm233 = vweird.f32 %v212
    %vm234 = vweird.f32 %v228
    %vm235 = vmor %vm233, %vm234
    %v236 = vsel %vm235, %v228, %v232
    %v237 = vand.u32 2147483647, %v212
    %vm238 = vcmp.eq.f32.partialorder %v237, 8.507059e+37
    %v239 = vand.u32 %v212, 2147483648
    %v240 = vor.u32 1.1754944e-38, %v239
    %v241 = vsel %vm238, %v240, %v236
    %v242 = vmul.f32 1.0, %v241
    %v243 = vtanh.pop %v175
    %v244 = vtanh.pop %v176
    %v245 = vmul.f32 %v227, 0.0
    %v246 = vmul.f32 %v242, 0.0
    %249 = vrot.lane.b32.xlu0 %v243, 64
    %v250 = vpop.permute.xlu0 %249
    %251 = vrot.lane.b32.xlu0 %v244, 64
    %v252 = vpop.permute.xlu0 %251
    %v255 = vmul.f32 %v227, %v250
    %v256 = vmul.f32 %v242, %v252
    %259 = vrot.lane.b32.xlu0 %v255, 32
    %v260 = vpop.permute.xlu0 %259
    %261 = vrot.lane.b32.xlu0 %v256, 32
    %v262 = vpop.permute.xlu0 %261
    %v265 = vadd.f32 %v245, %v260
    %v266 = vadd.f32 %v246, %v262
    %v267 = vtanh.pop %v265
    %v268 = vtanh.pop %v266
    %271 = vrot.lane.b32.xlu0 %v267, 64
    %v272 = vpop.permute.xlu0 %271
    %273 = vrot.lane.b32.xlu0 %v268, 64
    %v274 = vpop.permute.xlu0 %273
    %v277 = vmul.f32 %v227, %v272
    %v278 = vmul.f32 %v242, %v274
    %v279 = vxor.u32 %v203, 2147483648
    %v280 = vxor.u32 %v204, 2147483648
    %v281 = vmul.f32 %v279, 1.442695
    %v282 = vpow.pop %v281
    %v283 = vmul.f32 %v280, 1.442695
    %v284 = vpow.pop %v283
    %v285 = vadd.f32 %v282, 1.0
    %v286 = vadd.f32 %v284, 1.0
    %v287 = vrcp.pop %v285
    %v288 = vmul.f32 %v285, %v287
    %v289 = vsub.f32 1.0, %v288
    %v290 = vmul.f32 %v287, %v289
    %v291 = vadd.f32 %v287, %v290
    %vm292 = vweird.f32 %v285
    %vm293 = vweird.f32 %v287
    %vm294 = vmor %vm292, %vm293
    %v295 = vsel %vm294, %v287, %v291
    %v296 = vand.u32 2147483647, %v285
    %vm297 = vcmp.eq.f32.partialorder %v296, 8.507059e+37
    %v298 = vand.u32 %v285, 2147483648
    %v299 = vor.u32 1.1754944e-38, %v298
    %v300 = vsel %vm297, %v299, %v295
    %v301 = vmul.f32 1.0, %v300
    %v302 = vrcp.pop %v286
    %v303 = vmul.f32 %v286, %v302
    %v304 = vsub.f32 1.0, %v303
    %v305 = vmul.f32 %v302, %v304
    %v306 = vadd.f32 %v302, %v305
    %vm307 = vweird.f32 %v286
    %vm308 = vweird.f32 %v302
    %vm309 = vmor %vm307, %vm308
    %v310 = vsel %vm309, %v302, %v306
    %v311 = vand.u32 2147483647, %v286
    %vm312 = vcmp.eq.f32.partialorder %v311, 8.507059e+37
    %v313 = vand.u32 %v286, 2147483648
    %v314 = vor.u32 1.1754944e-38, %v313
    %v315 = vsel %vm312, %v314, %v310
    %v316 = vmul.f32 1.0, %v315
    %v317 = vtanh.pop %v203
    %v318 = vtanh.pop %v204
    %v319 = vmul.f32 %v301, 0.0
    %v320 = vmul.f32 %v316, 0.0
    %323 = vrot.lane.b32.xlu0 %v317, 64
    %v324 = vpop.permute.xlu0 %323
    %325 = vrot.lane.b32.xlu0 %v318, 64
    %v326 = vpop.permute.xlu0 %325
    %v329 = vmul.f32 %v301, %v324
    %v330 = vmul.f32 %v316, %v326
    %333 = vrot.lane.b32.xlu0 %v329, 32
    %v334 = vpop.permute.xlu0 %333
    %335 = vrot.lane.b32.xlu0 %v330, 32
    %v336 = vpop.permute.xlu0 %335
    %v339 = vadd.f32 %v319, %v334
    %v340 = vadd.f32 %v320, %v336
    %v341 = vtanh.pop %v339
    %v342 = vtanh.pop %v340
    %345 = vrot.lane.b32.xlu0 %v341, 64
    %v346 = vpop.permute.xlu0 %345
    %347 = vrot.lane.b32.xlu0 %v342, 64
    %v348 = vpop.permute.xlu0 %347
    %v351 = vmul.f32 %v301, %v346
    %v352 = vmul.f32 %v316, %v348
    %355 = vrot.lane.b32.xlu0 %v277, 32
    %v356 = vpop.permute.xlu0 %355
    %357 = vrot.lane.b32.xlu0 %v278, 32
    %v358 = vpop.permute.xlu0 %357
    %vm361 = vcmask 253952
    %362 = vst.msk [vmem:[#allocation9] sm:$0x1] %vm361, %v356
    %363 = vst.msk [vmem:[#allocation9 + $0x8] sm:$0x1] %vm361, %v358
    %366 = vrot.lane.b32.xlu0 %v351, 64
    %v367 = vpop.permute.xlu0 %366
    %368 = vrot.lane.b32.xlu0 %v352, 64
    %v369 = vpop.permute.xlu0 %368
    %vm372 = vcmask 516352
    %373 = vst.msk [vmem:[#allocation9 + $0x7] sm:$0x1] %vm372, %v367
    %374 = vst.msk [vmem:[#allocation9 + $0xf] sm:$0x1] %vm372, %v369
    %v375 = vld [vmem:[#allocation2 + $0x1] ss:$0 sm:$0xff]
    %v376 = vld [vmem:[#allocation2 + $0x11] ss:$0 sm:$0xff]
    %v377 = vrot.slane %v278, 7
    %vm378 = vcmask 1041409
    %v379 = vsel %vm378, %v377, %v277
    %380 = vrot.lane.b32.xlu0 %v379, 32
    %v381 = vpop.permute.xlu0 %380
    %v382 = vsel %vm147, %v381, 0
    %384 = vmatpush.msra.mxu0 0.0
    %385 = vmatpush.msra.mxu0 0.0
    %386 = vmatpush.msra.mxu0 0.0
    %387 = vmatpush.msra.mxu0 0.0
    %388 = vmatpush.msra.mxu0 0.0
    %389 = vmatpush.msra.mxu0 0.0
    %390 = vmatpush.msra.mxu0 0.0
    %391 = vmatpush.msra.mxu0 0.0
    %392 = vmatpush.msra.mxu0 0.0
    %393 = vmatpush.msra.mxu0 0.0
    %394 = vmatpush.msra.mxu0 0.0
    %395 = vmatpush.msra.mxu0 0.0
    %396 = vmatpush.msra.mxu0 %v143
    %397 = vmatpush.msra.mxu0 %v141
    %398 = vmatpush.msra.mxu0 %v139
    %399 = vmatpush.msra.mxu0 %v137
    %400 = vmatmul.f32.gmra.mxu0 %v382
    %v401 = vpop.f32.mrf.mxu0
    %v402 = vadd.f32 0.0, %v401
    %403 = vdwg.mxu0
    %v405 = vrot.slane %v402, 1
    %v408 = vadd.f32 %v375, %v402
    %v409 = vadd.f32 %v376, %v405
    %v410 = vld [vmem:[#allocation2 + $0xe] ss:$0 sm:$0xff]
    %v411 = vld [vmem:[#allocation2 + $0x1e] ss:$0 sm:$0xff]
    %v412 = vrot.slane %v352, 7
    %v413 = vsel %vm378, %v412, %v351
    %414 = vrot.lane.b32.xlu0 %v413, 32
    %v415 = vpop.permute.xlu0 %414
    %v416 = vsel %vm147, %v415, 0
    %418 = vmatpush.msra.mxu0 0.0
    %419 = vmatpush.msra.mxu0 0.0
    %420 = vmatpush.msra.mxu0 0.0
    %421 = vmatpush.msra.mxu0 0.0
    %422 = vmatpush.msra.mxu0 0.0
    %423 = vmatpush.msra.mxu0 0.0
    %424 = vmatpush.msra.mxu0 0.0
    %425 = vmatpush.msra.mxu0 0.0
    %426 = vmatpush.msra.mxu0 0.0
    %427 = vmatpush.msra.mxu0 0.0
    %428 = vmatpush.msra.mxu0 0.0
    %429 = vmatpush.msra.mxu0 0.0
    %430 = vmatpush.msra.mxu0 %v144
    %431 = vmatpush.msra.mxu0 %v142
    %432 = vmatpush.msra.mxu0 %v140
    %433 = vmatpush.msra.mxu0 %v138
    %434 = vmatmul.f32.gmra.mxu0 %v416
    %v435 = vpop.f32.mrf.mxu0
    %v436 = vadd.f32 0.0, %v435
    %437 = vdwg.mxu0
    %v439 = vrot.slane %v436, 1
    %v442 = vadd.f32 %v410, %v436
    %v443 = vadd.f32 %v411, %v439
    %v444 = vxor.u32 %v408, 2147483648
    %v445 = vxor.u32 %v409, 2147483648
    %v446 = vmul.f32 %v444, 1.442695
    %v447 = vpow.pop %v446
    %v448 = vmul.f32 %v445, 1.442695
    %v449 = vpow.pop %v448
    %v450 = vadd.f32 %v447, 1.0
    %v451 = vadd.f32 %v449, 1.0
    %v452 = vrcp.pop %v450
    %v453 = vmul.f32 %v450, %v452
    %v454 = vsub.f32 1.0, %v453
    %v455 = vmul.f32 %v452, %v454
    %v456 = vadd.f32 %v452, %v455
    %vm457 = vweird.f32 %v450
    %vm458 = vweird.f32 %v452
    %vm459 = vmor %vm457, %vm458
    %v460 = vsel %vm459, %v452, %v456
    %v461 = vand.u32 2147483647, %v450
    %vm462 = vcmp.eq.f32.partialorder %v461, 8.507059e+37
    %v463 = vand.u32 %v450, 2147483648
    %v464 = vor.u32 1.1754944e-38, %v463
    %v465 = vsel %vm462, %v464, %v460
    %v466 = vmul.f32 1.0, %v465
    %v467 = vrcp.pop %v451
    %v468 = vmul.f32 %v451, %v467
    %v469 = vsub.f32 1.0, %v468
    %v470 = vmul.f32 %v467, %v469
    %v471 = vadd.f32 %v467, %v470
    %vm472 = vweird.f32 %v451
    %vm473 = vweird.f32 %v467
    %vm474 = vmor %vm472, %vm473
    %v475 = vsel %vm474, %v467, %v471
    %v476 = vand.u32 2147483647, %v451
    %vm477 = vcmp.eq.f32.partialorder %v476, 8.507059e+37
    %v478 = vand.u32 %v451, 2147483648
    %v479 = vor.u32 1.1754944e-38, %v478
    %v480 = vsel %vm477, %v479, %v475
    %v481 = vmul.f32 1.0, %v480
    %v482 = vtanh.pop %v408
    %v483 = vtanh.pop %v409
    %v484 = vmul.f32 %v466, %v265
    %v485 = vmul.f32 %v481, %v266
    %488 = vrot.lane.b32.xlu0 %v482, 64
    %v489 = vpop.permute.xlu0 %488
    %490 = vrot.lane.b32.xlu0 %v483, 64
    %v491 = vpop.permute.xlu0 %490
    %v494 = vmul.f32 %v466, %v489
    %v495 = vmul.f32 %v481, %v491
    %498 = vrot.lane.b32.xlu0 %v494, 32
    %v499 = vpop.permute.xlu0 %498
    %500 = vrot.lane.b32.xlu0 %v495, 32
    %v501 = vpop.permute.xlu0 %500
    %v504 = vadd.f32 %v484, %v499
    %v505 = vadd.f32 %v485, %v501
    %v506 = vtanh.pop %v504
    %v507 = vtanh.pop %v505
    %510 = vrot.lane.b32.xlu0 %v506, 64
    %v511 = vpop.permute.xlu0 %510
    %512 = vrot.lane.b32.xlu0 %v507, 64
    %v513 = vpop.permute.xlu0 %512
    %v516 = vmul.f32 %v466, %v511
    %v517 = vmul.f32 %v481, %v513
    %v518 = vxor.u32 %v442, 2147483648
    %v519 = vxor.u32 %v443, 2147483648
    %v520 = vmul.f32 %v518, 1.442695
    %v521 = vpow.pop %v520
    %v522 = vmul.f32 %v519, 1.442695
    %v523 = vpow.pop %v522
    %v524 = vadd.f32 %v521, 1.0
    %v525 = vadd.f32 %v523, 1.0
    %v526 = vrcp.pop %v524
    %v527 = vmul.f32 %v524, %v526
    %v528 = vsub.f32 1.0, %v527
    %v529 = vmul.f32 %v526, %v528
    %v530 = vadd.f32 %v526, %v529
    %vm531 = vweird.f32 %v524
    %vm532 = vweird.f32 %v526
    %vm533 = vmor %vm531, %vm532
    %v534 = vsel %vm533, %v526, %v530
    %v535 = vand.u32 2147483647, %v524
    %vm536 = vcmp.eq.f32.partialorder %v535, 8.507059e+37
    %v537 = vand.u32 %v524, 2147483648
    %v538 = vor.u32 1.1754944e-38, %v537
    %v539 = vsel %vm536, %v538, %v534
    %v540 = vmul.f32 1.0, %v539
    %v541 = vrcp.pop %v525
    %v542 = vmul.f32 %v525, %v541
    %v543 = vsub.f32 1.0, %v542
    %v544 = vmul.f32 %v541, %v543
    %v545 = vadd.f32 %v541, %v544
    %vm546 = vweird.f32 %v525
    %vm547 = vweird.f32 %v541
    %vm548 = vmor %vm546, %vm547
    %v549 = vsel %vm548, %v541, %v545
    %v550 = vand.u32 2147483647, %v525
    %vm551 = vcmp.eq.f32.partialorder %v550, 8.507059e+37
    %v552 = vand.u32 %v525, 2147483648
    %v553 = vor.u32 1.1754944e-38, %v552
    %v554 = vsel %vm551, %v553, %v549
    %v555 = vmul.f32 1.0, %v554
    %v556 = vtanh.pop %v442
    %v557 = vtanh.pop %v443
    %v558 = vmul.f32 %v540, %v339
    %v559 = vmul.f32 %v555, %v340
    %562 = vrot.lane.b32.xlu0 %v556, 64
    %v563 = vpop.permute.xlu0 %562
    %564 = vrot.lane.b32.xlu0 %v557, 64
    %v565 = vpop.permute.xlu0 %564
    %v568 = vmul.f32 %v540, %v563
    %v569 = vmul.f32 %v555, %v565
    %572 = vrot.lane.b32.xlu0 %v568, 32
    %v573 = vpop.permute.xlu0 %572
    %574 = vrot.lane.b32.xlu0 %v569, 32
    %v575 = vpop.permute.xlu0 %574
    %v578 = vadd.f32 %v558, %v573
    %v579 = vadd.f32 %v559, %v575
    %v580 = vtanh.pop %v578
    %v581 = vtanh.pop %v579
    %584 = vrot.lane.b32.xlu0 %v580, 64
    %v585 = vpop.permute.xlu0 %584
    %586 = vrot.lane.b32.xlu0 %v581, 64
    %v587 = vpop.permute.xlu0 %586
    %v590 = vmul.f32 %v540, %v585
    %v591 = vmul.f32 %v555, %v587
    %594 = vrot.lane.b32.xlu0 %v516, 32
    %v595 = vpop.permute.xlu0 %594
    %596 = vrot.lane.b32.xlu0 %v517, 32
    %v597 = vpop.permute.xlu0 %596
    %600 = vst.msk [vmem:[#allocation9 + $0x1] sm:$0x1] %vm361, %v595
    %601 = vst.msk [vmem:[#allocation9 + $0x9] sm:$0x1] %vm361, %v597
    %604 = vrot.lane.b32.xlu0 %v590, 64
    %v605 = vpop.permute.xlu0 %604
    %606 = vrot.lane.b32.xlu0 %v591, 64
    %v607 = vpop.permute.xlu0 %606
    %610 = vst.msk [vmem:[#allocation9 + $0x6] sm:$0x1] %vm372, %v605
    %611 = vst.msk [vmem:[#allocation9 + $0xe] sm:$0x1] %vm372, %v607
    %v612 = vld [vmem:[#allocation2 + $0x2] ss:$0 sm:$0xff]
    %v613 = vld [vmem:[#allocation2 + $0x12] ss:$0 sm:$0xff]
    %v614 = vrot.slane %v517, 7
    %v615 = vsel %vm378, %v614, %v516
    %616 = vrot.lane.b32.xlu0 %v615, 32
    %v617 = vpop.permute.xlu0 %616
    %v618 = vsel %vm147, %v617, 0
    %620 = vmatpush.msra.mxu0 0.0
    %621 = vmatpush.msra.mxu0 0.0
    %622 = vmatpush.msra.mxu0 0.0
    %623 = vmatpush.msra.mxu0 0.0
    %624 = vmatpush.msra.mxu0 0.0
    %625 = vmatpush.msra.mxu0 0.0
    %626 = vmatpush.msra.mxu0 0.0
    %627 = vmatpush.msra.mxu0 0.0
    %628 = vmatpush.msra.mxu0 0.0
    %629 = vmatpush.msra.mxu0 0.0
    %630 = vmatpush.msra.mxu0 0.0
    %631 = vmatpush.msra.mxu0 0.0
    %632 = vmatpush.msra.mxu0 %v143
    %633 = vmatpush.msra.mxu0 %v141
    %634 = vmatpush.msra.mxu0 %v139
    %635 = vmatpush.msra.mxu0 %v137
    %636 = vmatmul.f32.gmra.mxu0 %v618
    %v637 = vpop.f32.mrf.mxu0
    %v638 = vadd.f32 0.0, %v637
    %639 = vdwg.mxu0
    %v641 = vrot.slane %v638, 1
    %v644 = vadd.f32 %v612, %v638
    %v645 = vadd.f32 %v613, %v641
    %v646 = vld [vmem:[#allocation2 + $0xd] ss:$0 sm:$0xff]
    %v647 = vld [vmem:[#allocation2 + $0x1d] ss:$0 sm:$0xff]
    %v648 = vrot.slane %v591, 7
    %v649 = vsel %vm378, %v648, %v590
    %650 = vrot.lane.b32.xlu0 %v649, 32
    %v651 = vpop.permute.xlu0 %650
    %v652 = vsel %vm147, %v651, 0
    %654 = vmatpush.msra.mxu0 0.0
    %655 = vmatpush.msra.mxu0 0.0
    %656 = vmatpush.msra.mxu0 0.0
    %657 = vmatpush.msra.mxu0 0.0
    %658 = vmatpush.msra.mxu0 0.0
    %659 = vmatpush.msra.mxu0 0.0
    %660 = vmatpush.msra.mxu0 0.0
    %661 = vmatpush.msra.mxu0 0.0
    %662 = vmatpush.msra.mxu0 0.0
    %663 = vmatpush.msra.mxu0 0.0
    %664 = vmatpush.msra.mxu0 0.0
    %665 = vmatpush.msra.mxu0 0.0
    %666 = vmatpush.msra.mxu0 %v144
    %667 = vmatpush.msra.mxu0 %v142
    %668 = vmatpush.msra.mxu0 %v140
    %669 = vmatpush.msra.mxu0 %v138
    %670 = vmatmul.f32.gmra.mxu0 %v652
    %v671 = vpop.f32.mrf.mxu0
    %v672 = vadd.f32 0.0, %v671
    %673 = vdwg.mxu0
    %v675 = vrot.slane %v672, 1
    %v678 = vadd.f32 %v646, %v672
    %v679 = vadd.f32 %v647, %v675
    %v680 = vxor.u32 %v644, 2147483648
    %v681 = vxor.u32 %v645, 2147483648
    %v682 = vmul.f32 %v680, 1.442695
    %v683 = vpow.pop %v682
    %v684 = vmul.f32 %v681, 1.442695
    %v685 = vpow.pop %v684
    %v686 = vadd.f32 %v683, 1.0
    %v687 = vadd.f32 %v685, 1.0
    %v688 = vrcp.pop %v686
    %v689 = vmul.f32 %v686, %v688
    %v690 = vsub.f32 1.0, %v689
    %v691 = vmul.f32 %v688, %v690
    %v692 = vadd.f32 %v688, %v691
    %vm693 = vweird.f32 %v686
    %vm694 = vweird.f32 %v688
    %vm695 = vmor %vm693, %vm694
    %v696 = vsel %vm695, %v688, %v692
    %v697 = vand.u32 2147483647, %v686
    %vm698 = vcmp.eq.f32.partialorder %v697, 8.507059e+37
    %v699 = vand.u32 %v686, 2147483648
    %v700 = vor.u32 1.1754944e-38, %v699
    %v701 = vsel %vm698, %v700, %v696
    %v702 = vmul.f32 1.0, %v701
    %v703 = vrcp.pop %v687
    %v704 = vmul.f32 %v687, %v703
    %v705 = vsub.f32 1.0, %v704
    %v706 = vmul.f32 %v703, %v705
    %v707 = vadd.f32 %v703, %v706
    %vm708 = vweird.f32 %v687
    %vm709 = vweird.f32 %v703
    %vm710 = vmor %vm708, %vm709
    %v711 = vsel %vm710, %v703, %v707
    %v712 = vand.u32 2147483647, %v687
    %vm713 = vcmp.eq.f32.partialorder %v712, 8.507059e+37
    %v714 = vand.u32 %v687, 2147483648
    %v715 = vor.u32 1.1754944e-38, %v714
    %v716 = vsel %vm713, %v715, %v711
    %v717 = vmul.f32 1.0, %v716
    %v718 = vtanh.pop %v644
    %v719 = vtanh.pop %v645
    %v720 = vmul.f32 %v702, %v504
    %v721 = vmul.f32 %v717, %v505
    %724 = vrot.lane.b32.xlu0 %v718, 64
    %v725 = vpop.permute.xlu0 %724
    %726 = vrot.lane.b32.xlu0 %v719, 64
    %v727 = vpop.permute.xlu0 %726
    %v730 = vmul.f32 %v702, %v725
    %v731 = vmul.f32 %v717, %v727
    %734 = vrot.lane.b32.xlu0 %v730, 32
    %v735 = vpop.permute.xlu0 %734
    %736 = vrot.lane.b32.xlu0 %v731, 32
    %v737 = vpop.permute.xlu0 %736
    %v740 = vadd.f32 %v720, %v735
    %v741 = vadd.f32 %v721, %v737
    %v742 = vtanh.pop %v740
    %v743 = vtanh.pop %v741
    %746 = vrot.lane.b32.xlu0 %v742, 64
    %v747 = vpop.permute.xlu0 %746
    %748 = vrot.lane.b32.xlu0 %v743, 64
    %v749 = vpop.permute.xlu0 %748
    %v752 = vmul.f32 %v702, %v747
    %v753 = vmul.f32 %v717, %v749
    %v754 = vxor.u32 %v678, 2147483648
    %v755 = vxor.u32 %v679, 2147483648
    %v756 = vmul.f32 %v754, 1.442695
    %v757 = vpow.pop %v756
    %v758 = vmul.f32 %v755, 1.442695
    %v759 = vpow.pop %v758
    %v760 = vadd.f32 %v757, 1.0
    %v761 = vadd.f32 %v759, 1.0
    %v762 = vrcp.pop %v760
    %v763 = vmul.f32 %v760, %v762
    %v764 = vsub.f32 1.0, %v763
    %v765 = vmul.f32 %v762, %v764
    %v766 = vadd.f32 %v762, %v765
    %vm767 = vweird.f32 %v760
    %vm768 = vweird.f32 %v762
    %vm769 = vmor %vm767, %vm768
    %v770 = vsel %vm769, %v762, %v766
    %v771 = vand.u32 2147483647, %v760
    %vm772 = vcmp.eq.f32.partialorder %v771, 8.507059e+37
    %v773 = vand.u32 %v760, 2147483648
    %v774 = vor.u32 1.1754944e-38, %v773
    %v775 = vsel %vm772, %v774, %v770
    %v776 = vmul.f32 1.0, %v775
    %v777 = vrcp.pop %v761
    %v778 = vmul.f32 %v761, %v777
    %v779 = vsub.f32 1.0, %v778
    %v780 = vmul.f32 %v777, %v779
    %v781 = vadd.f32 %v777, %v780
    %vm782 = vweird.f32 %v761
    %vm783 = vweird.f32 %v777
    %vm784 = vmor %vm782, %vm783
    %v785 = vsel %vm784, %v777, %v781
    %v786 = vand.u32 2147483647, %v761
    %vm787 = vcmp.eq.f32.partialorder %v786, 8.507059e+37
    %v788 = vand.u32 %v761, 2147483648
    %v789 = vor.u32 1.1754944e-38, %v788
    %v790 = vsel %vm787, %v789, %v785
    %v791 = vmul.f32 1.0, %v790
    %v792 = vtanh.pop %v678
    %v793 = vtanh.pop %v679
    %v794 = vmul.f32 %v776, %v578
    %v795 = vmul.f32 %v791, %v579
    %798 = vrot.lane.b32.xlu0 %v792, 64
    %v799 = vpop.permute.xlu0 %798
    %800 = vrot.lane.b32.xlu0 %v793, 64
    %v801 = vpop.permute.xlu0 %800
    %v804 = vmul.f32 %v776, %v799
    %v805 = vmul.f32 %v791, %v801
    %808 = vrot.lane.b32.xlu0 %v804, 32
    %v809 = vpop.permute.xlu0 %808
    %810 = vrot.lane.b32.xlu0 %v805, 32
    %v811 = vpop.permute.xlu0 %810
    %v814 = vadd.f32 %v794, %v809
    %v815 = vadd.f32 %v795, %v811
    %v816 = vtanh.pop %v814
    %v817 = vtanh.pop %v815
    %820 = vrot.lane.b32.xlu0 %v816, 64
    %v821 = vpop.permute.xlu0 %820
    %822 = vrot.lane.b32.xlu0 %v817, 64
    %v823 = vpop.permute.xlu0 %822
    %v826 = vmul.f32 %v776, %v821
    %v827 = vmul.f32 %v791, %v823
    %830 = vrot.lane.b32.xlu0 %v752, 32
    %v831 = vpop.permute.xlu0 %830
    %832 = vrot.lane.b32.xlu0 %v753, 32
    %v833 = vpop.permute.xlu0 %832
    %836 = vst.msk [vmem:[#allocation9 + $0x2] sm:$0x1] %vm361, %v831
    %837 = vst.msk [vmem:[#allocation9 + $0xa] sm:$0x1] %vm361, %v833
    %840 = vrot.lane.b32.xlu0 %v826, 64
    %v841 = vpop.permute.xlu0 %840
    %842 = vrot.lane.b32.xlu0 %v827, 64
    %v843 = vpop.permute.xlu0 %842
    %846 = vst.msk [vmem:[#allocation9 + $0x5] sm:$0x1] %vm372, %v841
    %847 = vst.msk [vmem:[#allocation9 + $0xd] sm:$0x1] %vm372, %v843
    %v848 = vld [vmem:[#allocation2 + $0x3] ss:$0 sm:$0xff]
    %v849 = vld [vmem:[#allocation2 + $0x13] ss:$0 sm:$0xff]
    %v850 = vrot.slane %v753, 7
    %v851 = vsel %vm378, %v850, %v752
    %852 = vrot.lane.b32.xlu0 %v851, 32
    %v853 = vpop.permute.xlu0 %852
    %v854 = vsel %vm147, %v853, 0
    %856 = vmatpush.msra.mxu0 0.0
    %857 = vmatpush.msra.mxu0 0.0
    %858 = vmatpush.msra.mxu0 0.0
    %859 = vmatpush.msra.mxu0 0.0
    %860 = vmatpush.msra.mxu0 0.0
    %861 = vmatpush.msra.mxu0 0.0
    %862 = vmatpush.msra.mxu0 0.0
    %863 = vmatpush.msra.mxu0 0.0
    %864 = vmatpush.msra.mxu0 0.0
    %865 = vmatpush.msra.mxu0 0.0
    %866 = vmatpush.msra.mxu0 0.0
    %867 = vmatpush.msra.mxu0 0.0
    %868 = vmatpush.msra.mxu0 %v143
    %869 = vmatpush.msra.mxu0 %v141
    %870 = vmatpush.msra.mxu0 %v139
    %871 = vmatpush.msra.mxu0 %v137
    %872 = vmatmul.f32.gmra.mxu0 %v854
    %v873 = vpop.f32.mrf.mxu0
    %v874 = vadd.f32 0.0, %v873
    %875 = vdwg.mxu0
    %v877 = vrot.slane %v874, 1
    %v880 = vadd.f32 %v848, %v874
    %v881 = vadd.f32 %v849, %v877
    %v882 = vld [vmem:[#allocation2 + $0xc] ss:$0 sm:$0xff]
    %v883 = vld [vmem:[#allocation2 + $0x1c] ss:$0 sm:$0xff]
    %v884 = vrot.slane %v827, 7
    %v885 = vsel %vm378, %v884, %v826
    %886 = vrot.lane.b32.xlu0 %v885, 32
    %v887 = vpop.permute.xlu0 %886
    %v888 = vsel %vm147, %v887, 0
    %890 = vmatpush.msra.mxu0 0.0
    %891 = vmatpush.msra.mxu0 0.0
    %892 = vmatpush.msra.mxu0 0.0
    %893 = vmatpush.msra.mxu0 0.0
    %894 = vmatpush.msra.mxu0 0.0
    %895 = vmatpush.msra.mxu0 0.0
    %896 = vmatpush.msra.mxu0 0.0
    %897 = vmatpush.msra.mxu0 0.0
    %898 = vmatpush.msra.mxu0 0.0
    %899 = vmatpush.msra.mxu0 0.0
    %900 = vmatpush.msra.mxu0 0.0
    %901 = vmatpush.msra.mxu0 0.0
    %902 = vmatpush.msra.mxu0 %v144
    %903 = vmatpush.msra.mxu0 %v142
    %904 = vmatpush.msra.mxu0 %v140
    %905 = vmatpush.msra.mxu0 %v138
    %906 = vmatmul.f32.gmra.mxu0 %v888
    %v907 = vpop.f32.mrf.mxu0
    %v908 = vadd.f32 0.0, %v907
    %909 = vdwg.mxu0
    %v911 = vrot.slane %v908, 1
    %v914 = vadd.f32 %v882, %v908
    %v915 = vadd.f32 %v883, %v911
    %v916 = vxor.u32 %v880, 2147483648
    %v917 = vxor.u32 %v881, 2147483648
    %v918 = vmul.f32 %v916, 1.442695
    %v919 = vpow.pop %v918
    %v920 = vmul.f32 %v917, 1.442695
    %v921 = vpow.pop %v920
    %v922 = vadd.f32 %v919, 1.0
    %v923 = vadd.f32 %v921, 1.0
    %v924 = vrcp.pop %v922
    %v925 = vmul.f32 %v922, %v924
    %v926 = vsub.f32 1.0, %v925
    %v927 = vmul.f32 %v924, %v926
    %v928 = vadd.f32 %v924, %v927
    %vm929 = vweird.f32 %v922
    %vm930 = vweird.f32 %v924
    %vm931 = vmor %vm929, %vm930
    %v932 = vsel %vm931, %v924, %v928
    %v933 = vand.u32 2147483647, %v922
    %vm934 = vcmp.eq.f32.partialorder %v933, 8.507059e+37
    %v935 = vand.u32 %v922, 2147483648
    %v936 = vor.u32 1.1754944e-38, %v935
    %v937 = vsel %vm934, %v936, %v932
    %v938 = vmul.f32 1.0, %v937
    %v939 = vrcp.pop %v923
    %v940 = vmul.f32 %v923, %v939
    %v941 = vsub.f32 1.0, %v940
    %v942 = vmul.f32 %v939, %v941
    %v943 = vadd.f32 %v939, %v942
    %vm944 = vweird.f32 %v923
    %vm945 = vweird.f32 %v939
    %vm946 = vmor %vm944, %vm945
    %v947 = vsel %vm946, %v939, %v943
    %v948 = vand.u32 2147483647, %v923
    %vm949 = vcmp.eq.f32.partialorder %v948, 8.507059e+37
    %v950 = vand.u32 %v923, 2147483648
    %v951 = vor.u32 1.1754944e-38, %v950
    %v952 = vsel %vm949, %v951, %v947
    %v953 = vmul.f32 1.0, %v952
    %v954 = vtanh.pop %v880
    %v955 = vtanh.pop %v881
    %v956 = vmul.f32 %v938, %v740
    %v957 = vmul.f32 %v953, %v741
    %960 = vrot.lane.b32.xlu0 %v954, 64
    %v961 = vpop.permute.xlu0 %960
    %962 = vrot.lane.b32.xlu0 %v955, 64
    %v963 = vpop.permute.xlu0 %962
    %v966 = vmul.f32 %v938, %v961
    %v967 = vmul.f32 %v953, %v963
    %970 = vrot.lane.b32.xlu0 %v966, 32
    %v971 = vpop.permute.xlu0 %970
    %972 = vrot.lane.b32.xlu0 %v967, 32
    %v973 = vpop.permute.xlu0 %972
    %v976 = vadd.f32 %v956, %v971
    %v977 = vadd.f32 %v957, %v973
    %v978 = vtanh.pop %v976
    %v979 = vtanh.pop %v977
    %982 = vrot.lane.b32.xlu0 %v978, 64
    %v983 = vpop.permute.xlu0 %982
    %984 = vrot.lane.b32.xlu0 %v979, 64
    %v985 = vpop.permute.xlu0 %984
    %v988 = vmul.f32 %v938, %v983
    %v989 = vmul.f32 %v953, %v985
    %v990 = vxor.u32 %v914, 2147483648
    %v991 = vxor.u32 %v915, 2147483648
    %v992 = vmul.f32 %v990, 1.442695
    %v993 = vpow.pop %v992
    %v994 = vmul.f32 %v991, 1.442695
    %v995 = vpow.pop %v994
    %v996 = vadd.f32 %v993, 1.0
    %v997 = vadd.f32 %v995, 1.0
    %v998 = vrcp.pop %v996
    %v999 = vmul.f32 %v996, %v998
    %v1000 = vsub.f32 1.0, %v999
    %v1001 = vmul.f32 %v998, %v1000
    %v1002 = vadd.f32 %v998, %v1001
    %vm1003 = vweird.f32 %v996
    %vm1004 = vweird.f32 %v998
    %vm1005 = vmor %vm1003, %vm1004
    %v1006 = vsel %vm1005, %v998, %v1002
    %v1007 = vand.u32 2147483647, %v996
    %vm1008 = vcmp.eq.f32.partialorder %v1007, 8.507059e+37
    %v1009 = vand.u32 %v996, 2147483648
    %v1010 = vor.u32 1.1754944e-38, %v1009
    %v1011 = vsel %vm1008, %v1010, %v1006
    %v1012 = vmul.f32 1.0, %v1011
    %v1013 = vrcp.pop %v997
    %v1014 = vmul.f32 %v997, %v1013
    %v1015 = vsub.f32 1.0, %v1014
    %v1016 = vmul.f32 %v1013, %v1015
    %v1017 = vadd.f32 %v1013, %v1016
    %vm1018 = vweird.f32 %v997
    %vm1019 = vweird.f32 %v1013
    %vm1020 = vmor %vm1018, %vm1019
    %v1021 = vsel %vm1020, %v1013, %v1017
    %v1022 = vand.u32 2147483647, %v997
    %vm1023 = vcmp.eq.f32.partialorder %v1022, 8.507059e+37
    %v1024 = vand.u32 %v997, 2147483648
    %v1025 = vor.u32 1.1754944e-38, %v1024
    %v1026 = vsel %vm1023, %v1025, %v1021
    %v1027 = vmul.f32 1.0, %v1026
    %v1028 = vtanh.pop %v914
    %v1029 = vtanh.pop %v915
    %v1030 = vmul.f32 %v1012, %v814
    %v1031 = vmul.f32 %v1027, %v815
    %1034 = vrot.lane.b32.xlu0 %v1028, 64
    %v1035 = vpop.permute.xlu0 %1034
    %1036 = vrot.lane.b32.xlu0 %v1029, 64
    %v1037 = vpop.permute.xlu0 %1036
    %v1040 = vmul.f32 %v1012, %v1035
    %v1041 = vmul.f32 %v1027, %v1037
    %1044 = vrot.lane.b32.xlu0 %v1040, 32
    %v1045 = vpop.permute.xlu0 %1044
    %1046 = vrot.lane.b32.xlu0 %v1041, 32
    %v1047 = vpop.permute.xlu0 %1046
    %v1050 = vadd.f32 %v1030, %v1045
    %v1051 = vadd.f32 %v1031, %v1047
    %v1052 = vtanh.pop %v1050
    %v1053 = vtanh.pop %v1051
    %1056 = vrot.lane.b32.xlu0 %v1052, 64
    %v1057 = vpop.permute.xlu0 %1056
    %1058 = vrot.lane.b32.xlu0 %v1053, 64
    %v1059 = vpop.permute.xlu0 %1058
    %v1062 = vmul.f32 %v1012, %v1057
    %v1063 = vmul.f32 %v1027, %v1059
    %1066 = vrot.lane.b32.xlu0 %v988, 32
    %v1067 = vpop.permute.xlu0 %1066
    %1068 = vrot.lane.b32.xlu0 %v989, 32
    %v1069 = vpop.permute.xlu0 %1068
    %1072 = vst.msk [vmem:[#allocation9 + $0x3] sm:$0x1] %vm361, %v1067
    %1073 = vst.msk [vmem:[#allocation9 + $0xb] sm:$0x1] %vm361, %v1069
    %1076 = vrot.lane.b32.xlu0 %v1062, 64
    %v1077 = vpop.permute.xlu0 %1076
    %1078 = vrot.lane.b32.xlu0 %v1063, 64
    %v1079 = vpop.permute.xlu0 %1078
    %1082 = vst.msk [vmem:[#allocation9 + $0x4] sm:$0x1] %vm372, %v1077
    %1083 = vst.msk [vmem:[#allocation9 + $0xc] sm:$0x1] %vm372, %v1079
    %v1084 = vld [vmem:[#allocation2 + $0x4] ss:$0 sm:$0xff]
    %v1085 = vld [vmem:[#allocation2 + $0x14] ss:$0 sm:$0xff]
    %v1086 = vrot.slane %v989, 7
    %v1087 = vsel %vm378, %v1086, %v988
    %1088 = vrot.lane.b32.xlu0 %v1087, 32
    %v1089 = vpop.permute.xlu0 %1088
    %v1090 = vsel %vm147, %v1089, 0
    %1092 = vmatpush.msra.mxu0 0.0
    %1093 = vmatpush.msra.mxu0 0.0
    %1094 = vmatpush.msra.mxu0 0.0
    %1095 = vmatpush.msra.mxu0 0.0
    %1096 = vmatpush.msra.mxu0 0.0
    %1097 = vmatpush.msra.mxu0 0.0
    %1098 = vmatpush.msra.mxu0 0.0
    %1099 = vmatpush.msra.mxu0 0.0
    %1100 = vmatpush.msra.mxu0 0.0
    %1101 = vmatpush.msra.mxu0 0.0
    %1102 = vmatpush.msra.mxu0 0.0
    %1103 = vmatpush.msra.mxu0 0.0
    %1104 = vmatpush.msra.mxu0 %v143
    %1105 = vmatpush.msra.mxu0 %v141
    %1106 = vmatpush.msra.mxu0 %v139
    %1107 = vmatpush.msra.mxu0 %v137
    %1108 = vmatmul.f32.gmra.mxu0 %v1090
    %v1109 = vpop.f32.mrf.mxu0
    %v1110 = vadd.f32 0.0, %v1109
    %1111 = vdwg.mxu0
    %v1113 = vrot.slane %v1110, 1
    %v1116 = vadd.f32 %v1084, %v1110
    %v1117 = vadd.f32 %v1085, %v1113
    %v1118 = vld [vmem:[#allocation2 + $0xb] ss:$0 sm:$0xff]
    %v1119 = vld [vmem:[#allocation2 + $0x1b] ss:$0 sm:$0xff]
    %v1120 = vrot.slane %v1063, 7
    %v1121 = vsel %vm378, %v1120, %v1062
    %1122 = vrot.lane.b32.xlu0 %v1121, 32
    %v1123 = vpop.permute.xlu0 %1122
    %v1124 = vsel %vm147, %v1123, 0
    %1126 = vmatpush.msra.mxu0 0.0
    %1127 = vmatpush.msra.mxu0 0.0
    %1128 = vmatpush.msra.mxu0 0.0
    %1129 = vmatpush.msra.mxu0 0.0
    %1130 = vmatpush.msra.mxu0 0.0
    %1131 = vmatpush.msra.mxu0 0.0
    %1132 = vmatpush.msra.mxu0 0.0
    %1133 = vmatpush.msra.mxu0 0.0
    %1134 = vmatpush.msra.mxu0 0.0
    %1135 = vmatpush.msra.mxu0 0.0
    %1136 = vmatpush.msra.mxu0 0.0
    %1137 = vmatpush.msra.mxu0 0.0
    %1138 = vmatpush.msra.mxu0 %v144
    %1139 = vmatpush.msra.mxu0 %v142
    %1140 = vmatpush.msra.mxu0 %v140
    %1141 = vmatpush.msra.mxu0 %v138
    %1142 = vmatmul.f32.gmra.mxu0 %v1124
    %v1143 = vpop.f32.mrf.mxu0
    %v1144 = vadd.f32 0.0, %v1143
    %1145 = vdwg.mxu0
    %v1147 = vrot.slane %v1144, 1
    %v1150 = vadd.f32 %v1118, %v1144
    %v1151 = vadd.f32 %v1119, %v1147
    %v1152 = vxor.u32 %v1116, 2147483648
    %v1153 = vxor.u32 %v1117, 2147483648
    %v1154 = vmul.f32 %v1152, 1.442695
    %v1155 = vpow.pop %v1154
    %v1156 = vmul.f32 %v1153, 1.442695
    %v1157 = vpow.pop %v1156
    %v1158 = vadd.f32 %v1155, 1.0
    %v1159 = vadd.f32 %v1157, 1.0
    %v1160 = vrcp.pop %v1158
    %v1161 = vmul.f32 %v1158, %v1160
    %v1162 = vsub.f32 1.0, %v1161
    %v1163 = vmul.f32 %v1160, %v1162
    %v1164 = vadd.f32 %v1160, %v1163
    %vm1165 = vweird.f32 %v1158
    %vm1166 = vweird.f32 %v1160
    %vm1167 = vmor %vm1165, %vm1166
    %v1168 = vsel %vm1167, %v1160, %v1164
    %v1169 = vand.u32 2147483647, %v1158
    %vm1170 = vcmp.eq.f32.partialorder %v1169, 8.507059e+37
    %v1171 = vand.u32 %v1158, 2147483648
    %v1172 = vor.u32 1.1754944e-38, %v1171
    %v1173 = vsel %vm1170, %v1172, %v1168
    %v1174 = vmul.f32 1.0, %v1173
    %v1175 = vrcp.pop %v1159
    %v1176 = vmul.f32 %v1159, %v1175
    %v1177 = vsub.f32 1.0, %v1176
    %v1178 = vmul.f32 %v1175, %v1177
    %v1179 = vadd.f32 %v1175, %v1178
    %vm1180 = vweird.f32 %v1159
    %vm1181 = vweird.f32 %v1175
    %vm1182 = vmor %vm1180, %vm1181
    %v1183 = vsel %vm1182, %v1175, %v1179
    %v1184 = vand.u32 2147483647, %v1159
    %vm1185 = vcmp.eq.f32.partialorder %v1184, 8.507059e+37
    %v1186 = vand.u32 %v1159, 2147483648
    %v1187 = vor.u32 1.1754944e-38, %v1186
    %v1188 = vsel %vm1185, %v1187, %v1183
    %v1189 = vmul.f32 1.0, %v1188
    %v1190 = vtanh.pop %v1116
    %v1191 = vtanh.pop %v1117
    %v1192 = vmul.f32 %v1174, %v976
    %v1193 = vmul.f32 %v1189, %v977
    %1196 = vrot.lane.b32.xlu0 %v1190, 64
    %v1197 = vpop.permute.xlu0 %1196
    %1198 = vrot.lane.b32.xlu0 %v1191, 64
    %v1199 = vpop.permute.xlu0 %1198
    %v1202 = vmul.f32 %v1174, %v1197
    %v1203 = vmul.f32 %v1189, %v1199
    %1206 = vrot.lane.b32.xlu0 %v1202, 32
    %v1207 = vpop.permute.xlu0 %1206
    %1208 = vrot.lane.b32.xlu0 %v1203, 32
    %v1209 = vpop.permute.xlu0 %1208
    %v1212 = vadd.f32 %v1192, %v1207
    %v1213 = vadd.f32 %v1193, %v1209
    %v1214 = vtanh.pop %v1212
    %v1215 = vtanh.pop %v1213
    %1218 = vrot.lane.b32.xlu0 %v1214, 64
    %v1219 = vpop.permute.xlu0 %1218
    %1220 = vrot.lane.b32.xlu0 %v1215, 64
    %v1221 = vpop.permute.xlu0 %1220
    %v1224 = vmul.f32 %v1174, %v1219
    %v1225 = vmul.f32 %v1189, %v1221
    %v1226 = vxor.u32 %v1150, 2147483648
    %v1227 = vxor.u32 %v1151, 2147483648
    %v1228 = vmul.f32 %v1226, 1.442695
    %v1229 = vpow.pop %v1228
    %v1230 = vmul.f32 %v1227, 1.442695
    %v1231 = vpow.pop %v1230
    %v1232 = vadd.f32 %v1229, 1.0
    %v1233 = vadd.f32 %v1231, 1.0
    %v1234 = vrcp.pop %v1232
    %v1235 = vmul.f32 %v1232, %v1234
    %v1236 = vsub.f32 1.0, %v1235
    %v1237 = vmul.f32 %v1234, %v1236
    %v1238 = vadd.f32 %v1234, %v1237
    %vm1239 = vweird.f32 %v1232
    %vm1240 = vweird.f32 %v1234
    %vm1241 = vmor %vm1239, %vm1240
    %v1242 = vsel %vm1241, %v1234, %v1238
    %v1243 = vand.u32 2147483647, %v1232
    %vm1244 = vcmp.eq.f32.partialorder %v1243, 8.507059e+37
    %v1245 = vand.u32 %v1232, 2147483648
    %v1246 = vor.u32 1.1754944e-38, %v1245
    %v1247 = vsel %vm1244, %v1246, %v1242
    %v1248 = vmul.f32 1.0, %v1247
    %v1249 = vrcp.pop %v1233
    %v1250 = vmul.f32 %v1233, %v1249
    %v1251 = vsub.f32 1.0, %v1250
    %v1252 = vmul.f32 %v1249, %v1251
    %v1253 = vadd.f32 %v1249, %v1252
    %vm1254 = vweird.f32 %v1233
    %vm1255 = vweird.f32 %v1249
    %vm1256 = vmor %vm1254, %vm1255
    %v1257 = vsel %vm1256, %v1249, %v1253
    %v1258 = vand.u32 2147483647, %v1233
    %vm1259 = vcmp.eq.f32.partialorder %v1258, 8.507059e+37
    %v1260 = vand.u32 %v1233, 2147483648
    %v1261 = vor.u32 1.1754944e-38, %v1260
    %v1262 = vsel %vm1259, %v1261, %v1257
    %v1263 = vmul.f32 1.0, %v1262
    %v1264 = vtanh.pop %v1150
    %v1265 = vtanh.pop %v1151
    %v1266 = vmul.f32 %v1248, %v1050
    %v1267 = vmul.f32 %v1263, %v1051
    %1270 = vrot.lane.b32.xlu0 %v1264, 64
    %v1271 = vpop.permute.xlu0 %1270
    %1272 = vrot.lane.b32.xlu0 %v1265, 64
    %v1273 = vpop.permute.xlu0 %1272
    %v1276 = vmul.f32 %v1248, %v1271
    %v1277 = vmul.f32 %v1263, %v1273
    %1280 = vrot.lane.b32.xlu0 %v1276, 32
    %v1281 = vpop.permute.xlu0 %1280
    %1282 = vrot.lane.b32.xlu0 %v1277, 32
    %v1283 = vpop.permute.xlu0 %1282
    %v1286 = vadd.f32 %v1266, %v1281
    %v1287 = vadd.f32 %v1267, %v1283
    %v1288 = vtanh.pop %v1286
    %v1289 = vtanh.pop %v1287
    %1292 = vrot.lane.b32.xlu0 %v1288, 64
    %v1293 = vpop.permute.xlu0 %1292
    %1294 = vrot.lane.b32.xlu0 %v1289, 64
    %v1295 = vpop.permute.xlu0 %1294
    %v1298 = vmul.f32 %v1248, %v1293
    %v1299 = vmul.f32 %v1263, %v1295
    %1302 = vrot.lane.b32.xlu0 %v1224, 32
    %v1303 = vpop.permute.xlu0 %1302
    %1304 = vrot.lane.b32.xlu0 %v1225, 32
    %v1305 = vpop.permute.xlu0 %1304
    %1308 = vst.msk [vmem:[#allocation9 + $0x4] sm:$0x1] %vm361, %v1303
    %1309 = vst.msk [vmem:[#allocation9 + $0xc] sm:$0x1] %vm361, %v1305
    %1312 = vrot.lane.b32.xlu0 %v1298, 64
    %v1313 = vpop.permute.xlu0 %1312
    %1314 = vrot.lane.b32.xlu0 %v1299, 64
    %v1315 = vpop.permute.xlu0 %1314
    %1318 = vst.msk [vmem:[#allocation9 + $0x3] sm:$0x1] %vm372, %v1313
    %1319 = vst.msk [vmem:[#allocation9 + $0xb] sm:$0x1] %vm372, %v1315
    %v1320 = vld [vmem:[#allocation2 + $0x5] ss:$0 sm:$0xff]
    %v1321 = vld [vmem:[#allocation2 + $0x15] ss:$0 sm:$0xff]
    %v1322 = vrot.slane %v1225, 7
    %v1323 = vsel %vm378, %v1322, %v1224
    %1324 = vrot.lane.b32.xlu0 %v1323, 32
    %v1325 = vpop.permute.xlu0 %1324
    %v1326 = vsel %vm147, %v1325, 0
    %1328 = vmatpush.msra.mxu0 0.0
    %1329 = vmatpush.msra.mxu0 0.0
    %1330 = vmatpush.msra.mxu0 0.0
    %1331 = vmatpush.msra.mxu0 0.0
    %1332 = vmatpush.msra.mxu0 0.0
    %1333 = vmatpush.msra.mxu0 0.0
    %1334 = vmatpush.msra.mxu0 0.0
    %1335 = vmatpush.msra.mxu0 0.0
    %1336 = vmatpush.msra.mxu0 0.0
    %1337 = vmatpush.msra.mxu0 0.0
    %1338 = vmatpush.msra.mxu0 0.0
    %1339 = vmatpush.msra.mxu0 0.0
    %1340 = vmatpush.msra.mxu0 %v143
    %1341 = vmatpush.msra.mxu0 %v141
    %1342 = vmatpush.msra.mxu0 %v139
    %1343 = vmatpush.msra.mxu0 %v137
    %1344 = vmatmul.f32.gmra.mxu0 %v1326
    %v1345 = vpop.f32.mrf.mxu0
    %v1346 = vadd.f32 0.0, %v1345
    %1347 = vdwg.mxu0
    %v1349 = vrot.slane %v1346, 1
    %v1352 = vadd.f32 %v1320, %v1346
    %v1353 = vadd.f32 %v1321, %v1349
    %v1354 = vld [vmem:[#allocation2 + $0xa] ss:$0 sm:$0xff]
    %v1355 = vld [vmem:[#allocation2 + $0x1a] ss:$0 sm:$0xff]
    %v1356 = vrot.slane %v1299, 7
    %v1357 = vsel %vm378, %v1356, %v1298
    %1358 = vrot.lane.b32.xlu0 %v1357, 32
    %v1359 = vpop.permute.xlu0 %1358
    %v1360 = vsel %vm147, %v1359, 0
    %1362 = vmatpush.msra.mxu0 0.0
    %1363 = vmatpush.msra.mxu0 0.0
    %1364 = vmatpush.msra.mxu0 0.0
    %1365 = vmatpush.msra.mxu0 0.0
    %1366 = vmatpush.msra.mxu0 0.0
    %1367 = vmatpush.msra.mxu0 0.0
    %1368 = vmatpush.msra.mxu0 0.0
    %1369 = vmatpush.msra.mxu0 0.0
    %1370 = vmatpush.msra.mxu0 0.0
    %1371 = vmatpush.msra.mxu0 0.0
    %1372 = vmatpush.msra.mxu0 0.0
    %1373 = vmatpush.msra.mxu0 0.0
    %1374 = vmatpush.msra.mxu0 %v144
    %1375 = vmatpush.msra.mxu0 %v142
    %1376 = vmatpush.msra.mxu0 %v140
    %1377 = vmatpush.msra.mxu0 %v138
    %1378 = vmatmul.f32.gmra.mxu0 %v1360
    %v1379 = vpop.f32.mrf.mxu0
    %v1380 = vadd.f32 0.0, %v1379
    %1381 = vdwg.mxu0
    %v1383 = vrot.slane %v1380, 1
    %v1386 = vadd.f32 %v1354, %v1380
    %v1387 = vadd.f32 %v1355, %v1383
    %v1388 = vxor.u32 %v1352, 2147483648
    %v1389 = vxor.u32 %v1353, 2147483648
    %v1390 = vmul.f32 %v1388, 1.442695
    %v1391 = vpow.pop %v1390
    %v1392 = vmul.f32 %v1389, 1.442695
    %v1393 = vpow.pop %v1392
    %v1394 = vadd.f32 %v1391, 1.0
    %v1395 = vadd.f32 %v1393, 1.0
    %v1396 = vrcp.pop %v1394
    %v1397 = vmul.f32 %v1394, %v1396
    %v1398 = vsub.f32 1.0, %v1397
    %v1399 = vmul.f32 %v1396, %v1398
    %v1400 = vadd.f32 %v1396, %v1399
    %vm1401 = vweird.f32 %v1394
    %vm1402 = vweird.f32 %v1396
    %vm1403 = vmor %vm1401, %vm1402
    %v1404 = vsel %vm1403, %v1396, %v1400
    %v1405 = vand.u32 2147483647, %v1394
    %vm1406 = vcmp.eq.f32.partialorder %v1405, 8.507059e+37
    %v1407 = vand.u32 %v1394, 2147483648
    %v1408 = vor.u32 1.1754944e-38, %v1407
    %v1409 = vsel %vm1406, %v1408, %v1404
    %v1410 = vmul.f32 1.0, %v1409
    %v1411 = vrcp.pop %v1395
    %v1412 = vmul.f32 %v1395, %v1411
    %v1413 = vsub.f32 1.0, %v1412
    %v1414 = vmul.f32 %v1411, %v1413
    %v1415 = vadd.f32 %v1411, %v1414
    %vm1416 = vweird.f32 %v1395
    %vm1417 = vweird.f32 %v1411
    %vm1418 = vmor %vm1416, %vm1417
    %v1419 = vsel %vm1418, %v1411, %v1415
    %v1420 = vand.u32 2147483647, %v1395
    %vm1421 = vcmp.eq.f32.partialorder %v1420, 8.507059e+37
    %v1422 = vand.u32 %v1395, 2147483648
    %v1423 = vor.u32 1.1754944e-38, %v1422
    %v1424 = vsel %vm1421, %v1423, %v1419
    %v1425 = vmul.f32 1.0, %v1424
    %v1426 = vtanh.pop %v1352
    %v1427 = vtanh.pop %v1353
    %v1428 = vmul.f32 %v1410, %v1212
    %v1429 = vmul.f32 %v1425, %v1213
    %1432 = vrot.lane.b32.xlu0 %v1426, 64
    %v1433 = vpop.permute.xlu0 %1432
    %1434 = vrot.lane.b32.xlu0 %v1427, 64
    %v1435 = vpop.permute.xlu0 %1434
    %v1438 = vmul.f32 %v1410, %v1433
    %v1439 = vmul.f32 %v1425, %v1435
    %1442 = vrot.lane.b32.xlu0 %v1438, 32
    %v1443 = vpop.permute.xlu0 %1442
    %1444 = vrot.lane.b32.xlu0 %v1439, 32
    %v1445 = vpop.permute.xlu0 %1444
    %v1448 = vadd.f32 %v1428, %v1443
    %v1449 = vadd.f32 %v1429, %v1445
    %v1450 = vtanh.pop %v1448
    %v1451 = vtanh.pop %v1449
    %1454 = vrot.lane.b32.xlu0 %v1450, 64
    %v1455 = vpop.permute.xlu0 %1454
    %1456 = vrot.lane.b32.xlu0 %v1451, 64
    %v1457 = vpop.permute.xlu0 %1456
    %v1460 = vmul.f32 %v1410, %v1455
    %v1461 = vmul.f32 %v1425, %v1457
    %v1462 = vxor.u32 %v1386, 2147483648
    %v1463 = vxor.u32 %v1387, 2147483648
    %v1464 = vmul.f32 %v1462, 1.442695
    %v1465 = vpow.pop %v1464
    %v1466 = vmul.f32 %v1463, 1.442695
    %v1467 = vpow.pop %v1466
    %v1468 = vadd.f32 %v1465, 1.0
    %v1469 = vadd.f32 %v1467, 1.0
    %v1470 = vrcp.pop %v1468
    %v1471 = vmul.f32 %v1468, %v1470
    %v1472 = vsub.f32 1.0, %v1471
    %v1473 = vmul.f32 %v1470, %v1472
    %v1474 = vadd.f32 %v1470, %v1473
    %vm1475 = vweird.f32 %v1468
    %vm1476 = vweird.f32 %v1470
    %vm1477 = vmor %vm1475, %vm1476
    %v1478 = vsel %vm1477, %v1470, %v1474
    %v1479 = vand.u32 2147483647, %v1468
    %vm1480 = vcmp.eq.f32.partialorder %v1479, 8.507059e+37
    %v1481 = vand.u32 %v1468, 2147483648
    %v1482 = vor.u32 1.1754944e-38, %v1481
    %v1483 = vsel %vm1480, %v1482, %v1478
    %v1484 = vmul.f32 1.0, %v1483
    %v1485 = vrcp.pop %v1469
    %v1486 = vmul.f32 %v1469, %v1485
    %v1487 = vsub.f32 1.0, %v1486
    %v1488 = vmul.f32 %v1485, %v1487
    %v1489 = vadd.f32 %v1485, %v1488
    %vm1490 = vweird.f32 %v1469
    %vm1491 = vweird.f32 %v1485
    %vm1492 = vmor %vm1490, %vm1491
    %v1493 = vsel %vm1492, %v1485, %v1489
    %v1494 = vand.u32 2147483647, %v1469
    %vm1495 = vcmp.eq.f32.partialorder %v1494, 8.507059e+37
    %v1496 = vand.u32 %v1469, 2147483648
    %v1497 = vor.u32 1.1754944e-38, %v1496
    %v1498 = vsel %vm1495, %v1497, %v1493
    %v1499 = vmul.f32 1.0, %v1498
    %v1500 = vtanh.pop %v1386
    %v1501 = vtanh.pop %v1387
    %v1502 = vmul.f32 %v1484, %v1286
    %v1503 = vmul.f32 %v1499, %v1287
    %1506 = vrot.lane.b32.xlu0 %v1500, 64
    %v1507 = vpop.permute.xlu0 %1506
    %1508 = vrot.lane.b32.xlu0 %v1501, 64
    %v1509 = vpop.permute.xlu0 %1508
    %v1512 = vmul.f32 %v1484, %v1507
    %v1513 = vmul.f32 %v1499, %v1509
    %1516 = vrot.lane.b32.xlu0 %v1512, 32
    %v1517 = vpop.permute.xlu0 %1516
    %1518 = vrot.lane.b32.xlu0 %v1513, 32
    %v1519 = vpop.permute.xlu0 %1518
    %v1522 = vadd.f32 %v1502, %v1517
    %v1523 = vadd.f32 %v1503, %v1519
    %v1524 = vtanh.pop %v1522
    %v1525 = vtanh.pop %v1523
    %1528 = vrot.lane.b32.xlu0 %v1524, 64
    %v1529 = vpop.permute.xlu0 %1528
    %1530 = vrot.lane.b32.xlu0 %v1525, 64
    %v1531 = vpop.permute.xlu0 %1530
    %v1534 = vmul.f32 %v1484, %v1529
    %v1535 = vmul.f32 %v1499, %v1531
    %1538 = vrot.lane.b32.xlu0 %v1460, 32
    %v1539 = vpop.permute.xlu0 %1538
    %1540 = vrot.lane.b32.xlu0 %v1461, 32
    %v1541 = vpop.permute.xlu0 %1540
    %1544 = vst.msk [vmem:[#allocation9 + $0x5] sm:$0x1] %vm361, %v1539
    %1545 = vst.msk [vmem:[#allocation9 + $0xd] sm:$0x1] %vm361, %v1541
    %1548 = vrot.lane.b32.xlu0 %v1534, 64
    %v1549 = vpop.permute.xlu0 %1548
    %1550 = vrot.lane.b32.xlu0 %v1535, 64
    %v1551 = vpop.permute.xlu0 %1550
    %1554 = vst.msk [vmem:[#allocation9 + $0x2] sm:$0x1] %vm372, %v1549
    %1555 = vst.msk [vmem:[#allocation9 + $0xa] sm:$0x1] %vm372, %v1551
    %v1556 = vld [vmem:[#allocation2 + $0x6] ss:$0 sm:$0xff]
    %v1557 = vld [vmem:[#allocation2 + $0x16] ss:$0 sm:$0xff]
    %v1558 = vrot.slane %v1461, 7
    %v1559 = vsel %vm378, %v1558, %v1460
    %1560 = vrot.lane.b32.xlu0 %v1559, 32
    %v1561 = vpop.permute.xlu0 %1560
    %v1562 = vsel %vm147, %v1561, 0
    %1564 = vmatpush.msra.mxu0 0.0
    %1565 = vmatpush.msra.mxu0 0.0
    %1566 = vmatpush.msra.mxu0 0.0
    %1567 = vmatpush.msra.mxu0 0.0
    %1568 = vmatpush.msra.mxu0 0.0
    %1569 = vmatpush.msra.mxu0 0.0
    %1570 = vmatpush.msra.mxu0 0.0
    %1571 = vmatpush.msra.mxu0 0.0
    %1572 = vmatpush.msra.mxu0 0.0
    %1573 = vmatpush.msra.mxu0 0.0
    %1574 = vmatpush.msra.mxu0 0.0
    %1575 = vmatpush.msra.mxu0 0.0
    %1576 = vmatpush.msra.mxu0 %v143
    %1577 = vmatpush.msra.mxu0 %v141
    %1578 = vmatpush.msra.mxu0 %v139
    %1579 = vmatpush.msra.mxu0 %v137
    %1580 = vmatmul.f32.gmra.mxu0 %v1562
    %v1581 = vpop.f32.mrf.mxu0
    %v1582 = vadd.f32 0.0, %v1581
    %1583 = vdwg.mxu0
    %v1585 = vrot.slane %v1582, 1
    %v1588 = vadd.f32 %v1556, %v1582
    %v1589 = vadd.f32 %v1557, %v1585
    %v1590 = vld [vmem:[#allocation2 + $0x9] ss:$0 sm:$0xff]
    %v1591 = vld [vmem:[#allocation2 + $0x19] ss:$0 sm:$0xff]
    %v1592 = vrot.slane %v1535, 7
    %v1593 = vsel %vm378, %v1592, %v1534
    %1594 = vrot.lane.b32.xlu0 %v1593, 32
    %v1595 = vpop.permute.xlu0 %1594
    %v1596 = vsel %vm147, %v1595, 0
    %1598 = vmatpush.msra.mxu0 0.0
    %1599 = vmatpush.msra.mxu0 0.0
    %1600 = vmatpush.msra.mxu0 0.0
    %1601 = vmatpush.msra.mxu0 0.0
    %1602 = vmatpush.msra.mxu0 0.0
    %1603 = vmatpush.msra.mxu0 0.0
    %1604 = vmatpush.msra.mxu0 0.0
    %1605 = vmatpush.msra.mxu0 0.0
    %1606 = vmatpush.msra.mxu0 0.0
    %1607 = vmatpush.msra.mxu0 0.0
    %1608 = vmatpush.msra.mxu0 0.0
    %1609 = vmatpush.msra.mxu0 0.0
    %1610 = vmatpush.msra.mxu0 %v144
    %1611 = vmatpush.msra.mxu0 %v142
    %1612 = vmatpush.msra.mxu0 %v140
    %1613 = vmatpush.msra.mxu0 %v138
    %1614 = vmatmul.f32.gmra.mxu0 %v1596
    %v1615 = vpop.f32.mrf.mxu0
    %v1616 = vadd.f32 0.0, %v1615
    %1617 = vdwg.mxu0
    %v1619 = vrot.slane %v1616, 1
    %v1622 = vadd.f32 %v1590, %v1616
    %v1623 = vadd.f32 %v1591, %v1619
    %v1624 = vxor.u32 %v1588, 2147483648
    %v1625 = vxor.u32 %v1589, 2147483648
    %v1626 = vmul.f32 %v1624, 1.442695
    %v1627 = vpow.pop %v1626
    %v1628 = vmul.f32 %v1625, 1.442695
    %v1629 = vpow.pop %v1628
    %v1630 = vadd.f32 %v1627, 1.0
    %v1631 = vadd.f32 %v1629, 1.0
    %v1632 = vrcp.pop %v1630
    %v1633 = vmul.f32 %v1630, %v1632
    %v1634 = vsub.f32 1.0, %v1633
    %v1635 = vmul.f32 %v1632, %v1634
    %v1636 = vadd.f32 %v1632, %v1635
    %vm1637 = vweird.f32 %v1630
    %vm1638 = vweird.f32 %v1632
    %vm1639 = vmor %vm1637, %vm1638
    %v1640 = vsel %vm1639, %v1632, %v1636
    %v1641 = vand.u32 2147483647, %v1630
    %vm1642 = vcmp.eq.f32.partialorder %v1641, 8.507059e+37
    %v1643 = vand.u32 %v1630, 2147483648
    %v1644 = vor.u32 1.1754944e-38, %v1643
    %v1645 = vsel %vm1642, %v1644, %v1640
    %v1646 = vmul.f32 1.0, %v1645
    %v1647 = vrcp.pop %v1631
    %v1648 = vmul.f32 %v1631, %v1647
    %v1649 = vsub.f32 1.0, %v1648
    %v1650 = vmul.f32 %v1647, %v1649
    %v1651 = vadd.f32 %v1647, %v1650
    %vm1652 = vweird.f32 %v1631
    %vm1653 = vweird.f32 %v1647
    %vm1654 = vmor %vm1652, %vm1653
    %v1655 = vsel %vm1654, %v1647, %v1651
    %v1656 = vand.u32 2147483647, %v1631
    %vm1657 = vcmp.eq.f32.partialorder %v1656, 8.507059e+37
    %v1658 = vand.u32 %v1631, 2147483648
    %v1659 = vor.u32 1.1754944e-38, %v1658
    %v1660 = vsel %vm1657, %v1659, %v1655
    %v1661 = vmul.f32 1.0, %v1660
    %v1662 = vtanh.pop %v1588
    %v1663 = vtanh.pop %v1589
    %v1664 = vmul.f32 %v1646, %v1448
    %v1665 = vmul.f32 %v1661, %v1449
    %1668 = vrot.lane.b32.xlu0 %v1662, 64
    %v1669 = vpop.permute.xlu0 %1668
    %1670 = vrot.lane.b32.xlu0 %v1663, 64
    %v1671 = vpop.permute.xlu0 %1670
    %v1674 = vmul.f32 %v1646, %v1669
    %v1675 = vmul.f32 %v1661, %v1671
    %1678 = vrot.lane.b32.xlu0 %v1674, 32
    %v1679 = vpop.permute.xlu0 %1678
    %1680 = vrot.lane.b32.xlu0 %v1675, 32
    %v1681 = vpop.permute.xlu0 %1680
    %v1684 = vadd.f32 %v1664, %v1679
    %v1685 = vadd.f32 %v1665, %v1681
    %v1686 = vtanh.pop %v1684
    %v1687 = vtanh.pop %v1685
    %1690 = vrot.lane.b32.xlu0 %v1686, 64
    %v1691 = vpop.permute.xlu0 %1690
    %1692 = vrot.lane.b32.xlu0 %v1687, 64
    %v1693 = vpop.permute.xlu0 %1692
    %v1696 = vmul.f32 %v1646, %v1691
    %v1697 = vmul.f32 %v1661, %v1693
    %v1698 = vxor.u32 %v1622, 2147483648
    %v1699 = vxor.u32 %v1623, 2147483648
    %v1700 = vmul.f32 %v1698, 1.442695
    %v1701 = vpow.pop %v1700
    %v1702 = vmul.f32 %v1699, 1.442695
    %v1703 = vpow.pop %v1702
    %v1704 = vadd.f32 %v1701, 1.0
    %v1705 = vadd.f32 %v1703, 1.0
    %v1706 = vrcp.pop %v1704
    %v1707 = vmul.f32 %v1704, %v1706
    %v1708 = vsub.f32 1.0, %v1707
    %v1709 = vmul.f32 %v1706, %v1708
    %v1710 = vadd.f32 %v1706, %v1709
    %vm1711 = vweird.f32 %v1704
    %vm1712 = vweird.f32 %v1706
    %vm1713 = vmor %vm1711, %vm1712
    %v1714 = vsel %vm1713, %v1706, %v1710
    %v1715 = vand.u32 2147483647, %v1704
    %vm1716 = vcmp.eq.f32.partialorder %v1715, 8.507059e+37
    %v1717 = vand.u32 %v1704, 2147483648
    %v1718 = vor.u32 1.1754944e-38, %v1717
    %v1719 = vsel %vm1716, %v1718, %v1714
    %v1720 = vmul.f32 1.0, %v1719
    %v1721 = vrcp.pop %v1705
    %v1722 = vmul.f32 %v1705, %v1721
    %v1723 = vsub.f32 1.0, %v1722
    %v1724 = vmul.f32 %v1721, %v1723
    %v1725 = vadd.f32 %v1721, %v1724
    %vm1726 = vweird.f32 %v1705
    %vm1727 = vweird.f32 %v1721
    %vm1728 = vmor %vm1726, %vm1727
    %v1729 = vsel %vm1728, %v1721, %v1725
    %v1730 = vand.u32 2147483647, %v1705
    %vm1731 = vcmp.eq.f32.partialorder %v1730, 8.507059e+37
    %v1732 = vand.u32 %v1705, 2147483648
    %v1733 = vor.u32 1.1754944e-38, %v1732
    %v1734 = vsel %vm1731, %v1733, %v1729
    %v1735 = vmul.f32 1.0, %v1734
    %v1736 = vtanh.pop %v1622
    %v1737 = vtanh.pop %v1623
    %v1738 = vmul.f32 %v1720, %v1522
    %v1739 = vmul.f32 %v1735, %v1523
    %1742 = vrot.lane.b32.xlu0 %v1736, 64
    %v1743 = vpop.permute.xlu0 %1742
    %1744 = vrot.lane.b32.xlu0 %v1737, 64
    %v1745 = vpop.permute.xlu0 %1744
    %v1748 = vmul.f32 %v1720, %v1743
    %v1749 = vmul.f32 %v1735, %v1745
    %1752 = vrot.lane.b32.xlu0 %v1748, 32
    %v1753 = vpop.permute.xlu0 %1752
    %1754 = vrot.lane.b32.xlu0 %v1749, 32
    %v1755 = vpop.permute.xlu0 %1754
    %v1758 = vadd.f32 %v1738, %v1753
    %v1759 = vadd.f32 %v1739, %v1755
    %v1760 = vtanh.pop %v1758
    %v1761 = vtanh.pop %v1759
    %1764 = vrot.lane.b32.xlu0 %v1760, 64
    %v1765 = vpop.permute.xlu0 %1764
    %1766 = vrot.lane.b32.xlu0 %v1761, 64
    %v1767 = vpop.permute.xlu0 %1766
    %v1770 = vmul.f32 %v1720, %v1765
    %v1771 = vmul.f32 %v1735, %v1767
    %1774 = vrot.lane.b32.xlu0 %v1696, 32
    %v1775 = vpop.permute.xlu0 %1774
    %1776 = vrot.lane.b32.xlu0 %v1697, 32
    %v1777 = vpop.permute.xlu0 %1776
    %1780 = vst.msk [vmem:[#allocation9 + $0x6] sm:$0x1] %vm361, %v1775
    %1781 = vst.msk [vmem:[#allocation9 + $0xe] sm:$0x1] %vm361, %v1777
    %1784 = vrot.lane.b32.xlu0 %v1770, 64
    %v1785 = vpop.permute.xlu0 %1784
    %1786 = vrot.lane.b32.xlu0 %v1771, 64
    %v1787 = vpop.permute.xlu0 %1786
    %1790 = vst.msk [vmem:[#allocation9 + $0x1] sm:$0x1] %vm372, %v1785
    %1791 = vst.msk [vmem:[#allocation9 + $0x9] sm:$0x1] %vm372, %v1787
    %v1792 = vld [vmem:[#allocation2 + $0x7] ss:$0 sm:$0xff]
    %v1793 = vld [vmem:[#allocation2 + $0x17] ss:$0 sm:$0xff]
    %v1794 = vrot.slane %v1697, 7
    %v1795 = vsel %vm378, %v1794, %v1696
    %1796 = vrot.lane.b32.xlu0 %v1795, 32
    %v1797 = vpop.permute.xlu0 %1796
    %v1798 = vsel %vm147, %v1797, 0
    %1800 = vmatpush.msra.mxu0 0.0
    %1801 = vmatpush.msra.mxu0 0.0
    %1802 = vmatpush.msra.mxu0 0.0
    %1803 = vmatpush.msra.mxu0 0.0
    %1804 = vmatpush.msra.mxu0 0.0
    %1805 = vmatpush.msra.mxu0 0.0
    %1806 = vmatpush.msra.mxu0 0.0
    %1807 = vmatpush.msra.mxu0 0.0
    %1808 = vmatpush.msra.mxu0 0.0
    %1809 = vmatpush.msra.mxu0 0.0
    %1810 = vmatpush.msra.mxu0 0.0
    %1811 = vmatpush.msra.mxu0 0.0
    %1812 = vmatpush.msra.mxu0 %v143
    %1813 = vmatpush.msra.mxu0 %v141
    %1814 = vmatpush.msra.mxu0 %v139
    %1815 = vmatpush.msra.mxu0 %v137
    %1816 = vmatmul.f32.gmra.mxu0 %v1798
    %v1817 = vpop.f32.mrf.mxu0
    %v1818 = vadd.f32 0.0, %v1817
    %1819 = vdwg.mxu0
    %v1821 = vrot.slane %v1818, 1
    %v1824 = vadd.f32 %v1792, %v1818
    %v1825 = vadd.f32 %v1793, %v1821
    %v1826 = vld [vmem:[#allocation2 + $0x8] ss:$0 sm:$0xff]
    %v1827 = vld [vmem:[#allocation2 + $0x18] ss:$0 sm:$0xff]
    %v1828 = vrot.slane %v1771, 7
    %v1829 = vsel %vm378, %v1828, %v1770
    %1830 = vrot.lane.b32.xlu0 %v1829, 32
    %v1831 = vpop.permute.xlu0 %1830
    %v1832 = vsel %vm147, %v1831, 0
    %1834 = vmatpush.msra.mxu0 0.0
    %1835 = vmatpush.msra.mxu0 0.0
    %1836 = vmatpush.msra.mxu0 0.0
    %1837 = vmatpush.msra.mxu0 0.0
    %1838 = vmatpush.msra.mxu0 0.0
    %1839 = vmatpush.msra.mxu0 0.0
    %1840 = vmatpush.msra.mxu0 0.0
    %1841 = vmatpush.msra.mxu0 0.0
    %1842 = vmatpush.msra.mxu0 0.0
    %1843 = vmatpush.msra.mxu0 0.0
    %1844 = vmatpush.msra.mxu0 0.0
    %1845 = vmatpush.msra.mxu0 0.0
    %1846 = vmatpush.msra.mxu0 %v144
    %1847 = vmatpush.msra.mxu0 %v142
    %1848 = vmatpush.msra.mxu0 %v140
    %1849 = vmatpush.msra.mxu0 %v138
    %1850 = vmatmul.f32.gmra.mxu0 %v1832
    %v1851 = vpop.f32.mrf.mxu0
    %v1852 = vadd.f32 0.0, %v1851
    %1853 = vdwg.mxu0
    %v1855 = vrot.slane %v1852, 1
    %v1858 = vadd.f32 %v1826, %v1852
    %v1859 = vadd.f32 %v1827, %v1855
    %v1860 = vxor.u32 %v1824, 2147483648
    %v1861 = vxor.u32 %v1825, 2147483648
    %v1862 = vmul.f32 %v1860, 1.442695
    %v1863 = vpow.pop %v1862
    %v1864 = vmul.f32 %v1861, 1.442695
    %v1865 = vpow.pop %v1864
    %v1866 = vadd.f32 %v1863, 1.0
    %v1867 = vadd.f32 %v1865, 1.0
    %v1868 = vrcp.pop %v1866
    %v1869 = vmul.f32 %v1866, %v1868
    %v1870 = vsub.f32 1.0, %v1869
    %v1871 = vmul.f32 %v1868, %v1870
    %v1872 = vadd.f32 %v1868, %v1871
    %vm1873 = vweird.f32 %v1866
    %vm1874 = vweird.f32 %v1868
    %vm1875 = vmor %vm1873, %vm1874
    %v1876 = vsel %vm1875, %v1868, %v1872
    %v1877 = vand.u32 2147483647, %v1866
    %vm1878 = vcmp.eq.f32.partialorder %v1877, 8.507059e+37
    %v1879 = vand.u32 %v1866, 2147483648
    %v1880 = vor.u32 1.1754944e-38, %v1879
    %v1881 = vsel %vm1878, %v1880, %v1876
    %v1882 = vmul.f32 1.0, %v1881
    %v1883 = vrcp.pop %v1867
    %v1884 = vmul.f32 %v1867, %v1883
    %v1885 = vsub.f32 1.0, %v1884
    %v1886 = vmul.f32 %v1883, %v1885
    %v1887 = vadd.f32 %v1883, %v1886
    %vm1888 = vweird.f32 %v1867
    %vm1889 = vweird.f32 %v1883
    %vm1890 = vmor %vm1888, %vm1889
    %v1891 = vsel %vm1890, %v1883, %v1887
    %v1892 = vand.u32 2147483647, %v1867
    %vm1893 = vcmp.eq.f32.partialorder %v1892, 8.507059e+37
    %v1894 = vand.u32 %v1867, 2147483648
    %v1895 = vor.u32 1.1754944e-38, %v1894
    %v1896 = vsel %vm1893, %v1895, %v1891
    %v1897 = vmul.f32 1.0, %v1896
    %v1898 = vtanh.pop %v1824
    %v1899 = vtanh.pop %v1825
    %v1900 = vmul.f32 %v1882, %v1684
    %v1901 = vmul.f32 %v1897, %v1685
    %1904 = vrot.lane.b32.xlu0 %v1898, 64
    %v1905 = vpop.permute.xlu0 %1904
    %1906 = vrot.lane.b32.xlu0 %v1899, 64
    %v1907 = vpop.permute.xlu0 %1906
    %v1910 = vmul.f32 %v1882, %v1905
    %v1911 = vmul.f32 %v1897, %v1907
    %1914 = vrot.lane.b32.xlu0 %v1910, 32
    %v1915 = vpop.permute.xlu0 %1914
    %1916 = vrot.lane.b32.xlu0 %v1911, 32
    %v1917 = vpop.permute.xlu0 %1916
    %v1920 = vadd.f32 %v1900, %v1915
    %v1921 = vadd.f32 %v1901, %v1917
    %v1922 = vtanh.pop %v1920
    %v1923 = vtanh.pop %v1921
    %1926 = vrot.lane.b32.xlu0 %v1922, 64
    %v1927 = vpop.permute.xlu0 %1926
    %1928 = vrot.lane.b32.xlu0 %v1923, 64
    %v1929 = vpop.permute.xlu0 %1928
    %v1932 = vmul.f32 %v1882, %v1927
    %v1933 = vmul.f32 %v1897, %v1929
    %v1934 = vxor.u32 %v1858, 2147483648
    %v1935 = vxor.u32 %v1859, 2147483648
    %v1936 = vmul.f32 %v1934, 1.442695
    %v1937 = vpow.pop %v1936
    %v1938 = vmul.f32 %v1935, 1.442695
    %v1939 = vpow.pop %v1938
    %v1940 = vadd.f32 %v1937, 1.0
    %v1941 = vadd.f32 %v1939, 1.0
    %v1942 = vrcp.pop %v1940
    %v1943 = vmul.f32 %v1940, %v1942
    %v1944 = vsub.f32 1.0, %v1943
    %v1945 = vmul.f32 %v1942, %v1944
    %v1946 = vadd.f32 %v1942, %v1945
    %vm1947 = vweird.f32 %v1940
    %vm1948 = vweird.f32 %v1942
    %vm1949 = vmor %vm1947, %vm1948
    %v1950 = vsel %vm1949, %v1942, %v1946
    %v1951 = vand.u32 2147483647, %v1940
    %vm1952 = vcmp.eq.f32.partialorder %v1951, 8.507059e+37
    %v1953 = vand.u32 %v1940, 2147483648
    %v1954 = vor.u32 1.1754944e-38, %v1953
    %v1955 = vsel %vm1952, %v1954, %v1950
    %v1956 = vmul.f32 1.0, %v1955
    %v1957 = vrcp.pop %v1941
    %v1958 = vmul.f32 %v1941, %v1957
    %v1959 = vsub.f32 1.0, %v1958
    %v1960 = vmul.f32 %v1957, %v1959
    %v1961 = vadd.f32 %v1957, %v1960
    %vm1962 = vweird.f32 %v1941
    %vm1963 = vweird.f32 %v1957
    %vm1964 = vmor %vm1962, %vm1963
    %v1965 = vsel %vm1964, %v1957, %v1961
    %v1966 = vand.u32 2147483647, %v1941
    %vm1967 = vcmp.eq.f32.partialorder %v1966, 8.507059e+37
    %v1968 = vand.u32 %v1941, 2147483648
    %v1969 = vor.u32 1.1754944e-38, %v1968
    %v1970 = vsel %vm1967, %v1969, %v1965
    %v1971 = vmul.f32 1.0, %v1970
    %v1972 = vtanh.pop %v1858
    %v1973 = vtanh.pop %v1859
    %v1974 = vmul.f32 %v1956, %v1758
    %v1975 = vmul.f32 %v1971, %v1759
    %1978 = vrot.lane.b32.xlu0 %v1972, 64
    %v1979 = vpop.permute.xlu0 %1978
    %1980 = vrot.lane.b32.xlu0 %v1973, 64
    %v1981 = vpop.permute.xlu0 %1980
    %v1984 = vmul.f32 %v1956, %v1979
    %v1985 = vmul.f32 %v1971, %v1981
    %1988 = vrot.lane.b32.xlu0 %v1984, 32
    %v1989 = vpop.permute.xlu0 %1988
    %1990 = vrot.lane.b32.xlu0 %v1985, 32
    %v1991 = vpop.permute.xlu0 %1990
    %v1994 = vadd.f32 %v1974, %v1989
    %v1995 = vadd.f32 %v1975, %v1991
    %v1996 = vtanh.pop %v1994
    %v1997 = vtanh.pop %v1995
    %2000 = vrot.lane.b32.xlu0 %v1996, 64
    %v2001 = vpop.permute.xlu0 %2000
    %2002 = vrot.lane.b32.xlu0 %v1997, 64
    %v2003 = vpop.permute.xlu0 %2002
    %v2006 = vmul.f32 %v1956, %v2001
    %v2007 = vmul.f32 %v1971, %v2003
    %2010 = vrot.lane.b32.xlu0 %v1932, 32
    %v2011 = vpop.permute.xlu0 %2010
    %2012 = vrot.lane.b32.xlu0 %v1933, 32
    %v2013 = vpop.permute.xlu0 %2012
    %2016 = vst.msk [vmem:[#allocation9 + $0x7] sm:$0x1] %vm361, %v2011
    %2017 = vst.msk [vmem:[#allocation9 + $0xf] sm:$0x1] %vm361, %v2013
    %2020 = vrot.lane.b32.xlu0 %v2006, 64
    %v2021 = vpop.permute.xlu0 %2020
    %2022 = vrot.lane.b32.xlu0 %v2007, 64
    %v2023 = vpop.permute.xlu0 %2022
    %2026 = vst.msk [vmem:[#allocation9] sm:$0x1] %vm372, %v2021
    %2027 = vst.msk [vmem:[#allocation9 + $0x8] sm:$0x1] %vm372, %v2023
    %2028 = vst.msk [vmem:[#allocation10] sm:$0x1] %vm361, %v2011
    %2029 = vst.msk [vmem:[#allocation10 + $0x2] sm:$0x1] %vm361, %v2013
    %2030 = vrot.lane.b32.xlu0 %v2006, 32
    %v2031 = vpop.permute.xlu0 %2030
    %2032 = vrot.lane.b32.xlu0 %v2007, 32
    %v2033 = vpop.permute.xlu0 %2032
    %2036 = vst.msk [vmem:[#allocation10 + $0x1] sm:$0x1] %vm361, %v2031
    %2037 = vst.msk [vmem:[#allocation10 + $0x3] sm:$0x1] %vm361, %v2033
    // Predicated region
    $region30: #{tpu_custom_call.1} parent=1 // pred_check
      _
    $region31: #{tpu_custom_call.1} parent=1 // pred_check_branch
      %2039 = sbr.rel (0) target = $region33
    $region32: #{tpu_custom_call.1} parent=1 // pred_region
      %2041 = vsyncadd [#allocation5], 0
      %s2042 = sshll.u32 [#allocation9], 4
      %s2043 = int_to_ptr.vmem [resolvable:$true] %s2042
      %s2044 = sshll.u32 %s4, 4
      %s2045 = int_to_ptr.hbm [resolvable:$true] %s2044
      %2050 = dma.vmem_to_hbm [thread:$0]  %s2043, 256, %s2045, [#allocation5], 128, 128, 8
    $region33: #{tpu_custom_call.1} parent=1 // pred_fallthru
      _
    // Predicated region
    $region34: #{tpu_custom_call.1} parent=1 // pred_check
      _
    $region35: #{tpu_custom_call.1} parent=1 // pred_check_branch
      %2052 = sbr.rel (0) target = $region37
    $region36: #{tpu_custom_call.1} parent=1 // pred_region
      %2054 = vsyncadd [#allocation11], 0
      %s2055 = sshll.u32 [#allocation10], 4
      %s2056 = int_to_ptr.vmem [resolvable:$true] %s2055
      %s2057 = sshll.u32 %s5, 4
      %s2058 = int_to_ptr.hbm [resolvable:$true] %s2057
      %2063 = dma.vmem_to_hbm [thread:$0]  %s2056, 64, %s2058, [#allocation11], 32, 32, 2
    $region37: #{tpu_custom_call.1} parent=1 // pred_fallthru
      _
    // Predicated region
    $region38: #{tpu_custom_call.1} parent=1 // pred_check
      _
    $region39: #{tpu_custom_call.1} parent=1 // pred_check_branch
      %2065 = sbr.rel (0) target = $region41
    $region40: #{tpu_custom_call.1} parent=1 // pred_region
      %2067 = dma.done [#allocation5], 256
    $region41: #{tpu_custom_call.1} parent=1 // pred_fallthru
      _
    // Predicated region
    $region42: #{tpu_custom_call.1} parent=1 // pred_check
      _
    $region43: #{tpu_custom_call.1} parent=1 // pred_check_branch
      %2069 = sbr.rel (0) target = $region45
    $region44: #{tpu_custom_call.1} parent=1 // pred_region
      %2071 = dma.done [#allocation11], 64
    $region45: #{tpu_custom_call.1} parent=1 // pred_fallthru
      _
    %2072 = vsyncpa [#allocation4], 1
    %2073 = vsyncpa [#allocation7], 1
    %2074 = vsyncpa [#allocation5], 1
    %2075 = vsyncpa [#allocation11], 1

</llo_original>
